<compile_context>
chip_gen: v5e
topology: v5e:2x2
jax: 0.10.0
libtpu: 0.0.40
codegen_flags: <defaults>
</compile_context>

<pallas_src>
import math

import jax
import jax.numpy as jnp
from jax import lax
from jax.experimental import pallas as pl
from jax.experimental.pallas import tpu as pltpu


def _softmax_lastdim(s):
    """Numerically-stable softmax along the last axis; divide on the EUP."""
    m = jnp.max(s, axis=-1, keepdims=True)
    e = jnp.exp(s - m)
    denom = jnp.sum(e, axis=-1, keepdims=True)
    return e * pl.reciprocal(denom, approx=True)


def self_attention_kernel(tok_ref,
                          wqkv_ref, bqkv_ref,
                          wsg_ref, bsg_ref,
                          wfnn_ref, bfnn_ref,
                          out_ref):
    """One grid step == TB batch elements.  All compute stays in VMEM."""
    TB, S, H = tok_ref.shape
    nf = 1.0 / math.sqrt(H)
    f32, bf16 = jnp.float32, jnp.bfloat16

    x = tok_ref[...]                                    # (TB, S, H) f32/bf16
    x_f32 = x.astype(f32)                               # for pooling
    x_bf = x.astype(bf16)                               # MXU operand

    wqkv = wqkv_ref[...]                                # (H, 3H) bf16 [Wk|Wq|Wv]
    # Hoisted bias broadcast: qkv() is called twice and JAX does not CSE
    # broadcast_in_dim, so materialize the broadcast exactly once.
    bias = jnp.broadcast_to(bqkv_ref[...], (TB * S, 3 * H))  # f32

    def qkv(inp_bf):
        """Fused K|Q|V projection: one (TB*S, H) x (H, 3H) MXU matmul."""
        y = jnp.dot(inp_bf.reshape(TB * S, H), wqkv,
                    preferred_element_type=f32) + bias
        y = y.reshape(TB, S, 3 * H)
        # NOTE: these lane slices are free views only when H % 128 == 0
        # (true at production hidden sizes); at small H they cost a shuffle.
        return y[..., 0:H], y[..., H:2 * H], y[..., 2 * H:3 * H]

    # ---- stage 1: self-attention over the sequence axis ------------------
    K, Q, V = qkv(x_bf)
    Vb = V.astype(bf16)
    s1 = jnp.einsum('bqh,bkh->bqk', Q.astype(bf16), K.astype(bf16),
                    preferred_element_type=f32) * nf          # (TB, S, S)
    attn1 = _softmax_lastdim(s1)
    out = jnp.einsum('bqk,bkh->bqh', attn1.astype(bf16), Vb,
                     preferred_element_type=f32)              # (TB, S, H)
    # TODO(synk): at production S, replace the materialized (S, S) score tile
    # with a flash-style online-softmax loop over K/V chunks (same for the
    # (H, H) stage-2 scores at large H) to keep TB large under v7x's VMEM.

    # ---- LayerNorm over the full (S, H) slab (eps=1e-8, identity affine) --
    inv_n = 1.0 / (S * H)
    mu = jnp.sum(jnp.sum(out, axis=2, keepdims=True),
                 axis=1, keepdims=True) * inv_n               # (TB, 1, 1)
    d = out - mu
    var = jnp.sum(jnp.sum(d * d, axis=2, keepdims=True),
                  axis=1, keepdims=True) * inv_n              # biased (torch)
    out_ln = d * lax.rsqrt(var + 1e-8)

    # ---- stage 2: "channel" attention with the same projection weights ----
    K_N, Q_N, V_N = qkv(out_ln.astype(bf16))
    # TODO(synk): if the Mosaic dump shows vxpose hot here (the 'bsh,bsg->bhg'
    # contraction is a transposed-LHS matmul), transpose out_ln once per step
    # and run stage 2 in (TB, H, S) layout instead.
    s2 = jnp.einsum('bsh,bsg->bhg', Q_N.astype(bf16), K_N.astype(bf16),
                    preferred_element_type=f32) * nf          # (TB, H, H)
    attn2 = _softmax_lastdim(s2)
    out_n = jnp.einsum('bsh,bhg->bsg', V_N.astype(bf16), attn2.astype(bf16),
                       preferred_element_type=f32)            # (TB, S, H)

    # ---- SGSA gate: degenerate (H -> 1) matmul done on the VPU ------------
    sg = jnp.sum(out_n * wsg_ref[...], axis=-1, keepdims=True) + bsg_ref[...]
    out_sgsa = sg * out_n                                     # (TB, S, H)

    # ---- pooled features + classifier: split wfnn, no (TB, 4H) concat -----
    inv_s = 1.0 / S
    mean_tok = jnp.sum(x_f32, axis=1) * inv_s                 # (TB, H)
    mean_sg = jnp.sum(out_sgsa, axis=1) * inv_s
    max_tok = jnp.max(x_f32, axis=1)
    max_sg = jnp.max(out_sgsa, axis=1)

    wfnn = wfnn_ref[...]                                      # (4, H, C) bf16
    logits = jnp.dot(mean_tok.astype(bf16), wfnn[0], preferred_element_type=f32)
    logits += jnp.dot(mean_sg.astype(bf16), wfnn[1], preferred_element_type=f32)
    logits += jnp.dot(max_tok.astype(bf16), wfnn[2], preferred_element_type=f32)
    logits += jnp.dot(max_sg.astype(bf16), wfnn[3], preferred_element_type=f32)
    out_ref[...] = logits + bfnn_ref[...]                     # (TB, C)


def _vmem_capacity_bytes():
    try:
        return int(pltpu.get_tpu_info().vmem_capacity_bytes)
    except Exception:
        return 64 * 1024 * 1024          # conservative default (v7x per-core)


def _pick_batch_tile(B, S, H, vmem_cap_bytes):
    """Largest per-step batch tile whose working set fits in VMEM."""
    per_elem = (2 * 2 * S * H            # bf16 token block, double-buffered
                + 4 * 3 * S * H          # fused K|Q|V activation slab (f32)
                + 4 * 2 * S * S          # stage-1 scores + probs (f32)
                + 4 * 2 * H * H          # stage-2 scores + probs (f32)
                + 4 * 5 * S * H          # out/out_ln/out_n/out_sgsa (+slack)
                + 2 * 4 * S * H)         # transient bf16 matmul-operand copies
    budget = int(vmem_cap_bytes * 0.55)  # headroom for weights/compiler scratch
    tb = max(1, min(B, budget // per_elem))
    # v7x megacore: prefer >= 2 grid steps (one per TensorCore) as long as a
    # half-batch step still fills the MXU's 256-row M dimension.
    if tb >= B and B > 1 and (B // 2) * S >= 256:
        tb = (B + 1) // 2
    if tb >= B:
        return B
    # Multi-step grid: keep the (TB, C) output block sublane-aligned.
    tb = max(8, (tb // 8) * 8)
    return min(tb, B)


def self_attention_forward(tokens, params, *, batch_tile=None,
                           dma_tokens_bf16=True):
    """tokens: (B, S, H) float32.  params use PyTorch (out, in) weight layout."""
    B, S, H = tokens.shape
    C = params["wfnn"].shape[0]

    vmem_cap = _vmem_capacity_bytes()
    TB = batch_tile if batch_tile is not None else _pick_batch_tile(B, S, H, vmem_cap)
    TB = max(1, min(TB, B))
    n_steps = pl.cdiv(B, TB)
    Bp = n_steps * TB
    if Bp != B:
        tokens = jnp.pad(tokens, ((0, Bp - B), (0, 0), (0, 0)))
    # bf16 token DMA halves the per-step HBM traffic (the only streamed input);
    # the kernel accumulates in f32 either way.
    tokens_in = tokens.astype(jnp.bfloat16) if dma_tokens_bf16 else tokens

    # Weight layout glue (plain JAX, free): PyTorch (out,in) -> (in,out); MXU
    # matmul operands pre-cast to bf16, biases kept f32.
    wqkv = jnp.concatenate([params["wk"].T, params["wq"].T, params["wv"].T],
                           axis=1).astype(jnp.bfloat16)            # (H, 3H)
    bqkv = jnp.concatenate([params["bk"], params["bq"], params["bv"]]
                           ).reshape(1, 3 * H).astype(jnp.float32)
    wsg = params["wsg"].reshape(1, H).astype(jnp.float32)
    bsg = params["bsg"].reshape(1, 1).astype(jnp.float32)
    # wfnn.T row-blocks correspond to [mean_tok | mean_sg | max_tok | max_sg].
    wfnn = params["wfnn"].T.reshape(4, H, C).astype(jnp.bfloat16)  # (4, H, C)
    bfnn = params["bfnn"].reshape(1, C).astype(jnp.float32)

    # vmem limit: ~48 MiB on v7x (64 MiB physical), ~96 MiB on v5e/v6e.
    vmem_limit = min(max(32 * 2 ** 20, int(0.75 * vmem_cap)),
                     100 * 2 ** 20, vmem_cap)

    flops_per_b = (2 * 2 * S * H * 3 * H      # two fused QKV projections
                   + 2 * 2 * S * S * H        # seq attention (scores + out)
                   + 2 * 2 * H * H * S        # channel attention (scores + out)
                   + 2 * S * H                # sgsa gate
                   + 2 * 4 * H * C)           # classifier
    transc_per_b = S * S + H * H + S + H + 1  # exps + reciprocals + rsqrt
    tok_item = 2 if dma_tokens_bf16 else 4
    weight_bytes = (2 * H * 3 * H + 4 * 3 * H + 4 * H + 4
                    + 2 * 4 * H * C + 4 * C)  # counted once: constant blocks
    cost = pl.CostEstimate(
        flops=Bp * flops_per_b,
        transcendentals=Bp * transc_per_b,
        bytes_accessed=tok_item * Bp * S * H + 4 * Bp * C + weight_bytes,
    )

    def run(single_buffer_weights):
        def wspec(shape):
            idx = lambda b: tuple(0 for _ in shape)
            if single_buffer_weights:
                return pl.BlockSpec(shape, idx, pipeline_mode=pl.Buffered(1))
            return pl.BlockSpec(shape, idx)

        out = pl.pallas_call(
            self_attention_kernel,
            out_shape=jax.ShapeDtypeStruct((Bp, C), jnp.float32),
            grid_spec=pltpu.PrefetchScalarGridSpec(
                num_scalar_prefetch=0,
                grid=(n_steps,),
                in_specs=[
                    pl.BlockSpec((TB, S, H), lambda b: (b, 0, 0)),  # tokens
                    wspec((H, 3 * H)), wspec((1, 3 * H)),           # fused K|Q|V
                    wspec((1, H)), wspec((1, 1)),                   # sgsa
                    wspec((4, H, C)), wspec((1, C)),                # classifier
                ],
                out_specs=pl.BlockSpec((TB, C), lambda b: (b, 0)),
            ),
            compiler_params=pltpu.CompilerParams(
                dimension_semantics=("parallel",),
                vmem_limit_bytes=int(vmem_limit),
            ),
            cost_estimate=cost,
        )(tokens_in, wqkv, bqkv, wsg, bsg, wfnn, bfnn)
        return jax.block_until_ready(out)

    # Constant-index weight blocks don't need double buffering; Buffered(1)
    # halves their VMEM footprint (matters most under v7x's 64 MiB VMEM).
    # Fall back to default buffering if this JAX build rejects buffer_count=1.
    try:
        out = run(True)
    except Exception:
        out = run(False)
    return out[:B]                                                # (B, C)


def reference_forward(tokens, p):
    """Pure-JAX f32 mirror of the PyTorch forward (for validation)."""
    H = tokens.shape[-1]
    nf = 1.0 / math.sqrt(H)

    def lin(x, w, b):
        return jnp.einsum("bsh,oh->bso", x, w) + b

    K = lin(tokens, p["wk"], p["bk"])
    Q = lin(tokens, p["wq"], p["bq"])
    V = lin(tokens, p["wv"], p["bv"])
    attn = jax.nn.softmax(jnp.einsum("bqh,bkh->bqk", Q, K) * nf, axis=-1)
    out = jnp.einsum("bqk,bkh->bqh", attn, V)

    mu = out.mean(axis=(1, 2), keepdims=True)
    var = ((out - mu) ** 2).mean(axis=(1, 2), keepdims=True)
    oln = (out - mu) / jnp.sqrt(var + 1e-8)

    K_N = lin(oln, p["wk"], p["bk"])
    Q_N = lin(oln, p["wq"], p["bq"])
    V_N = lin(oln, p["wv"], p["bv"])
    attn_n = jax.nn.softmax(jnp.einsum("bsh,bsg->bhg", Q_N, K_N) * nf, axis=-1)
    out_n = jnp.einsum("bsh,bhg->bsg", V_N, attn_n)

    sg = jnp.einsum("bsh,oh->bso", out_n, p["wsg"]) + p["bsg"]
    out_sgsa = sg * out_n
    catd = jnp.concatenate([tokens, out_sgsa], axis=2)
    A = jnp.mean(catd, axis=1)
    Bm = jnp.max(catd, axis=1)
    feat = jnp.concatenate([A, Bm], axis=1)
    return feat @ p["wfnn"].T + p["bfnn"]


if __name__ == "__main__":
    B, S, H, C = 2, 8, 32, 4   # batch, seq, hidden_size, num_classes

    key = jax.random.PRNGKey(0)
    ks = jax.random.split(key, 12)
    scale = 1.0 / math.sqrt(H)
    params = {
        "wk": jax.random.normal(ks[0], (H, H), jnp.float32) * scale,
        "bk": jax.random.normal(ks[1], (H,), jnp.float32) * 0.01,
        "wq": jax.random.normal(ks[2], (H, H), jnp.float32) * scale,
        "bq": jax.random.normal(ks[3], (H,), jnp.float32) * 0.01,
        "wv": jax.random.normal(ks[4], (H, H), jnp.float32) * scale,
        "bv": jax.random.normal(ks[5], (H,), jnp.float32) * 0.01,
        "wsg": jax.random.normal(ks[6], (1, H), jnp.float32) * scale,
        "bsg": jax.random.normal(ks[7], (1,), jnp.float32) * 0.01,
        "wfnn": jax.random.normal(ks[8], (C, 4 * H), jnp.float32) * (1.0 / math.sqrt(4 * H)),
        "bfnn": jax.random.normal(ks[9], (C,), jnp.float32) * 0.01,
    }
    tokens = jax.random.normal(ks[10], (B, S, H), jnp.float32)

    pred = self_attention_forward(tokens, params)
    pred = jax.block_until_ready(pred)

    ref = reference_forward(tokens, params)
    assert pred.shape == (B, C)
    # Tolerance covers the intentional bf16 MXU operands (f32 accumulation),
    # bf16 token DMA and the EUP approximate-reciprocal softmax denominators,
    # compounded across the two attention stages; use f32 operands and
    # approx=False for bit-tighter parity with the PyTorch reference.
    assert jnp.allclose(pred, ref, atol=5e-2, rtol=5e-2), (pred, ref)

    print("KERNEL_OK")
</pallas_src>

<mosaic_0001>
module attributes {stable_mosaic.version = 11 : i64} {
  func.func @self_attention_kernel(%arg0: i32, %arg1: memref<2x8x32xbf16, #tpu.memory_space<vmem>>, %arg2: memref<32x96xbf16, #tpu.memory_space<vmem>>, %arg3: memref<1x96xf32, #tpu.memory_space<vmem>>, %arg4: memref<1x32xf32, #tpu.memory_space<vmem>>, %arg5: memref<1x1xf32, #tpu.memory_space<vmem>>, %arg6: memref<4x32x4xbf16, #tpu.memory_space<vmem>>, %arg7: memref<1x4xf32, #tpu.memory_space<vmem>>, %arg8: memref<2x4xf32, #tpu.memory_space<vmem>>) attributes {dimension_semantics = [#tpu.dimension_semantics<parallel>], iteration_bounds = array<i64: 1>, scalar_prefetch = 0 : i64, scratch_operands = 0 : i64, tpu.core_type = #tpu.core_type<tc>, window_params = [{transform_indices = @transform_0, window_bounds = array<i64: 2, 8, 32>}, {pipeline_mode = #tpu.pipeline_mode<synchronous>, transform_indices = @transform_1, window_bounds = array<i64: 32, 96>}, {pipeline_mode = #tpu.pipeline_mode<synchronous>, transform_indices = @transform_2, window_bounds = array<i64: 1, 96>}, {pipeline_mode = #tpu.pipeline_mode<synchronous>, transform_indices = @transform_3, window_bounds = array<i64: 1, 32>}, {pipeline_mode = #tpu.pipeline_mode<synchronous>, transform_indices = @transform_4, window_bounds = array<i64: 1, 1>}, {pipeline_mode = #tpu.pipeline_mode<synchronous>, transform_indices = @transform_5, window_bounds = array<i64: 4, 32, 4>}, {pipeline_mode = #tpu.pipeline_mode<synchronous>, transform_indices = @transform_6, window_bounds = array<i64: 1, 4>}, {transform_indices = @transform_7, window_bounds = array<i64: 2, 4>}]} {
    %c0 = arith.constant 0 : index
    %c0_0 = arith.constant 0 : index
    %c0_1 = arith.constant 0 : index
    %0 = vector.load %arg1[%c0, %c0_0, %c0_1] : memref<2x8x32xbf16, #tpu.memory_space<vmem>>, vector<2x8x32xbf16>
    %1 = arith.extf %0 : vector<2x8x32xbf16> to vector<2x8x32xf32>
    %c0_2 = arith.constant 0 : index
    %c0_3 = arith.constant 0 : index
    %2 = vector.load %arg2[%c0_2, %c0_3] : memref<32x96xbf16, #tpu.memory_space<vmem>>, vector<32x96xbf16>
    %c0_4 = arith.constant 0 : index
    %c0_5 = arith.constant 0 : index
    %3 = vector.load %arg3[%c0_4, %c0_5] : memref<1x96xf32, #tpu.memory_space<vmem>>, vector<1x96xf32>
    %4 = vector.shape_cast %3 : vector<1x96xf32> to vector<1x96xf32>
    %5 = vector.broadcast %4 : vector<1x96xf32> to vector<16x96xf32>
    %6 = vector.shape_cast %0 : vector<2x8x32xbf16> to vector<16x32xbf16>
    %cst = arith.constant dense<0.000000e+00> : vector<16x96xf32>
    %7 = tpu.matmul %6, %2, %cst {dimension_numbers = #tpu.dot_dimension_numbers<[1], [0], [0], [1], [0, 0, 1, 1], [], []>} : vector<16x32xbf16>, vector<32x96xbf16>, vector<16x96xf32> -> vector<16x96xf32>
    %8 = arith.addf %7, %5 : vector<16x96xf32>
    %9 = vector.shape_cast %8 : vector<16x96xf32> to vector<2x8x96xf32>
    %10 = vector.extract_strided_slice %9 {offsets = [0, 0, 0], sizes = [2, 8, 32], strides = [1, 1, 1]} : vector<2x8x96xf32> to vector<2x8x32xf32>
    %11 = vector.extract_strided_slice %9 {offsets = [0, 0, 32], sizes = [2, 8, 32], strides = [1, 1, 1]} : vector<2x8x96xf32> to vector<2x8x32xf32>
    %12 = vector.extract_strided_slice %9 {offsets = [0, 0, 64], sizes = [2, 8, 32], strides = [1, 1, 1]} : vector<2x8x96xf32> to vector<2x8x32xf32>
    %13 = arith.truncf %12 : vector<2x8x32xf32> to vector<2x8x32xbf16>
    %14 = arith.truncf %11 : vector<2x8x32xf32> to vector<2x8x32xbf16>
    %15 = arith.truncf %10 : vector<2x8x32xf32> to vector<2x8x32xbf16>
    "tpu.trace_start"() <{level = 10 : i32, message = "bqh,bkh->bqk"}> : () -> ()
    %cst_6 = arith.constant dense<0.000000e+00> : vector<2x8x8xf32>
    %16 = tpu.matmul %14, %15, %cst_6 {dimension_numbers = #tpu.dot_dimension_numbers<[2], [2], [1], [1], [0, 0, 0, 1, 1, 1], [0], [0]>} : vector<2x8x32xbf16>, vector<2x8x32xbf16>, vector<2x8x8xf32> -> vector<2x8x8xf32>
    "tpu.trace_stop"() : () -> ()
    %cst_7 = arith.constant 0.176776692 : f32
    %17 = vector.broadcast %cst_7 : f32 to vector<2x8x8xf32>
    %18 = arith.mulf %16, %17 : vector<2x8x8xf32>
    %cst_8 = arith.constant dense<0xFF800000> : vector<2x8xf32>
    %19 = vector.multi_reduction <maximumf>, %18, %cst_8 [2] : vector<2x8x8xf32> to vector<2x8xf32>
    %20 = vector.shape_cast %19 : vector<2x8xf32> to vector<2x8x1xf32>
    %21 = vector.broadcast %20 : vector<2x8x1xf32> to vector<2x8x8xf32>
    %22 = arith.subf %18, %21 : vector<2x8x8xf32>
    %23 = math.exp %22 : vector<2x8x8xf32>
    %cst_9 = arith.constant dense<0.000000e+00> : vector<2x8xf32>
    %24 = vector.multi_reduction <add>, %23, %cst_9 [2] : vector<2x8x8xf32> to vector<2x8xf32>
    %25 = vector.shape_cast %24 : vector<2x8xf32> to vector<2x8x1xf32>
    %26 = tpu.reciprocal %25 {approx = true} : vector<2x8x1xf32> -> vector<2x8x1xf32>
    %27 = vector.broadcast %26 : vector<2x8x1xf32> to vector<2x8x8xf32>
    %28 = arith.mulf %23, %27 : vector<2x8x8xf32>
    %29 = arith.truncf %28 : vector<2x8x8xf32> to vector<2x8x8xbf16>
    "tpu.trace_start"() <{level = 10 : i32, message = "bqk,bkh->bqh"}> : () -> ()
    %cst_10 = arith.constant dense<0.000000e+00> : vector<2x8x32xf32>
    %30 = tpu.matmul %29, %13, %cst_10 {dimension_numbers = #tpu.dot_dimension_numbers<[2], [1], [1], [2], [0, 0, 0, 1, 1, 2], [0], [0]>} : vector<2x8x8xbf16>, vector<2x8x32xbf16>, vector<2x8x32xf32> -> vector<2x8x32xf32>
    "tpu.trace_stop"() : () -> ()
    %cst_11 = arith.constant dense<0.000000e+00> : vector<2x8xf32>
    %31 = vector.multi_reduction <add>, %30, %cst_11 [2] : vector<2x8x32xf32> to vector<2x8xf32>
    %32 = vector.shape_cast %31 : vector<2x8xf32> to vector<2x8x1xf32>
    %cst_12 = arith.constant dense<0.000000e+00> : vector<2x1xf32>
    %33 = vector.multi_reduction <add>, %32, %cst_12 [1] : vector<2x8x1xf32> to vector<2x1xf32>
    %34 = vector.shape_cast %33 : vector<2x1xf32> to vector<2x1x1xf32>
    %cst_13 = arith.constant 3.906250e-03 : f32
    %35 = vector.broadcast %cst_13 : f32 to vector<2x1x1xf32>
    %36 = arith.mulf %34, %35 : vector<2x1x1xf32>
    %37 = vector.broadcast %36 : vector<2x1x1xf32> to vector<2x8x32xf32>
    %38 = arith.subf %30, %37 : vector<2x8x32xf32>
    %39 = arith.mulf %38, %38 : vector<2x8x32xf32>
    %cst_14 = arith.constant dense<0.000000e+00> : vector<2x8xf32>
    %40 = vector.multi_reduction <add>, %39, %cst_14 [2] : vector<2x8x32xf32> to vector<2x8xf32>
    %41 = vector.shape_cast %40 : vector<2x8xf32> to vector<2x8x1xf32>
    %cst_15 = arith.constant dense<0.000000e+00> : vector<2x1xf32>
    %42 = vector.multi_reduction <add>, %41, %cst_15 [1] : vector<2x8x1xf32> to vector<2x1xf32>
    %43 = vector.shape_cast %42 : vector<2x1xf32> to vector<2x1x1xf32>
    %cst_16 = arith.constant 3.906250e-03 : f32
    %44 = vector.broadcast %cst_16 : f32 to vector<2x1x1xf32>
    %45 = arith.mulf %43, %44 : vector<2x1x1xf32>
    %cst_17 = arith.constant 9.99999993E-9 : f32
    %46 = vector.broadcast %cst_17 : f32 to vector<2x1x1xf32>
    %47 = arith.addf %45, %46 : vector<2x1x1xf32>
    %48 = math.rsqrt %47 : vector<2x1x1xf32>
    %49 = vector.broadcast %48 : vector<2x1x1xf32> to vector<2x8x32xf32>
    %50 = arith.mulf %38, %49 : vector<2x8x32xf32>
    %51 = arith.truncf %50 : vector<2x8x32xf32> to vector<2x8x32xbf16>
    %52 = vector.shape_cast %51 : vector<2x8x32xbf16> to vector<16x32xbf16>
    %cst_18 = arith.constant dense<0.000000e+00> : vector<16x96xf32>
    %53 = tpu.matmul %52, %2, %cst_18 {dimension_numbers = #tpu.dot_dimension_numbers<[1], [0], [0], [1], [0, 0, 1, 1], [], []>} : vector<16x32xbf16>, vector<32x96xbf16>, vector<16x96xf32> -> vector<16x96xf32>
    %54 = arith.addf %53, %5 : vector<16x96xf32>
    %55 = vector.shape_cast %54 : vector<16x96xf32> to vector<2x8x96xf32>
    %56 = vector.extract_strided_slice %55 {offsets = [0, 0, 0], sizes = [2, 8, 32], strides = [1, 1, 1]} : vector<2x8x96xf32> to vector<2x8x32xf32>
    %57 = vector.extract_strided_slice %55 {offsets = [0, 0, 32], sizes = [2, 8, 32], strides = [1, 1, 1]} : vector<2x8x96xf32> to vector<2x8x32xf32>
    %58 = vector.extract_strided_slice %55 {offsets = [0, 0, 64], sizes = [2, 8, 32], strides = [1, 1, 1]} : vector<2x8x96xf32> to vector<2x8x32xf32>
    %59 = arith.truncf %57 : vector<2x8x32xf32> to vector<2x8x32xbf16>
    %60 = arith.truncf %56 : vector<2x8x32xf32> to vector<2x8x32xbf16>
    "tpu.trace_start"() <{level = 10 : i32, message = "bsh,bsg->bhg"}> : () -> ()
    %cst_19 = arith.constant dense<0.000000e+00> : vector<2x32x32xf32>
    %61 = tpu.matmul %59, %60, %cst_19 {dimension_numbers = #tpu.dot_dimension_numbers<[1], [1], [2], [2], [0, 0, 0, 2, 1, 2], [0], [0]>} : vector<2x8x32xbf16>, vector<2x8x32xbf16>, vector<2x32x32xf32> -> vector<2x32x32xf32>
    "tpu.trace_stop"() : () -> ()
    %cst_20 = arith.constant 0.176776692 : f32
    %62 = vector.broadcast %cst_20 : f32 to vector<2x32x32xf32>
    %63 = arith.mulf %61, %62 : vector<2x32x32xf32>
    %cst_21 = arith.constant dense<0xFF800000> : vector<2x32xf32>
    %64 = vector.multi_reduction <maximumf>, %63, %cst_21 [2] : vector<2x32x32xf32> to vector<2x32xf32>
    %65 = vector.shape_cast %64 : vector<2x32xf32> to vector<2x32x1xf32>
    %66 = vector.broadcast %65 : vector<2x32x1xf32> to vector<2x32x32xf32>
    %67 = arith.subf %63, %66 : vector<2x32x32xf32>
    %68 = math.exp %67 : vector<2x32x32xf32>
    %cst_22 = arith.constant dense<0.000000e+00> : vector<2x32xf32>
    %69 = vector.multi_reduction <add>, %68, %cst_22 [2] : vector<2x32x32xf32> to vector<2x32xf32>
    %70 = vector.shape_cast %69 : vector<2x32xf32> to vector<2x32x1xf32>
    %71 = tpu.reciprocal %70 {approx = true} : vector<2x32x1xf32> -> vector<2x32x1xf32>
    %72 = vector.broadcast %71 : vector<2x32x1xf32> to vector<2x32x32xf32>
    %73 = arith.mulf %68, %72 : vector<2x32x32xf32>
    %74 = arith.truncf %58 : vector<2x8x32xf32> to vector<2x8x32xbf16>
    %75 = arith.truncf %73 : vector<2x32x32xf32> to vector<2x32x32xbf16>
    "tpu.trace_start"() <{level = 10 : i32, message = "bsh,bhg->bsg"}> : () -> ()
    %cst_23 = arith.constant dense<0.000000e+00> : vector<2x8x32xf32>
    %76 = tpu.matmul %74, %75, %cst_23 {dimension_numbers = #tpu.dot_dimension_numbers<[2], [1], [1], [2], [0, 0, 0, 1, 1, 2], [0], [0]>} : vector<2x8x32xbf16>, vector<2x32x32xbf16>, vector<2x8x32xf32> -> vector<2x8x32xf32>
    "tpu.trace_stop"() : () -> ()
    %c0_24 = arith.constant 0 : index
    %c0_25 = arith.constant 0 : index
    %77 = vector.load %arg4[%c0_24, %c0_25] : memref<1x32xf32, #tpu.memory_space<vmem>>, vector<1x32xf32>
    %78 = vector.shape_cast %77 : vector<1x32xf32> to vector<1x1x32xf32>
    %79 = vector.broadcast %78 : vector<1x1x32xf32> to vector<2x8x32xf32>
    %80 = arith.mulf %76, %79 : vector<2x8x32xf32>
    %cst_26 = arith.constant dense<0.000000e+00> : vector<2x8xf32>
    %81 = vector.multi_reduction <add>, %80, %cst_26 [2] : vector<2x8x32xf32> to vector<2x8xf32>
    %82 = vector.shape_cast %81 : vector<2x8xf32> to vector<2x8x1xf32>
    %c0_27 = arith.constant 0 : index
    %c0_28 = arith.constant 0 : index
    %83 = vector.load %arg5[%c0_27, %c0_28] : memref<1x1xf32, #tpu.memory_space<vmem>>, vector<1x1xf32>
    %84 = vector.shape_cast %83 : vector<1x1xf32> to vector<1x1x1xf32>
    %85 = vector.broadcast %84 : vector<1x1x1xf32> to vector<2x8x1xf32>
    %86 = arith.addf %82, %85 : vector<2x8x1xf32>
    %87 = vector.broadcast %86 : vector<2x8x1xf32> to vector<2x8x32xf32>
    %88 = arith.mulf %87, %76 : vector<2x8x32xf32>
    %cst_29 = arith.constant dense<0.000000e+00> : vector<2x32xf32>
    %89 = vector.multi_reduction <add>, %1, %cst_29 [1] : vector<2x8x32xf32> to vector<2x32xf32>
    %cst_30 = arith.constant 1.250000e-01 : f32
    %90 = vector.broadcast %cst_30 : f32 to vector<2x32xf32>
    %91 = arith.mulf %89, %90 : vector<2x32xf32>
    %cst_31 = arith.constant dense<0.000000e+00> : vector<2x32xf32>
    %92 = vector.multi_reduction <add>, %88, %cst_31 [1] : vector<2x8x32xf32> to vector<2x32xf32>
    %cst_32 = arith.constant 1.250000e-01 : f32
    %93 = vector.broadcast %cst_32 : f32 to vector<2x32xf32>
    %94 = arith.mulf %92, %93 : vector<2x32xf32>
    %cst_33 = arith.constant dense<0xFF800000> : vector<2x32xf32>
    %95 = vector.multi_reduction <maximumf>, %1, %cst_33 [1] : vector<2x8x32xf32> to vector<2x32xf32>
    %cst_34 = arith.constant dense<0xFF800000> : vector<2x32xf32>
    %96 = vector.multi_reduction <maximumf>, %88, %cst_34 [1] : vector<2x8x32xf32> to vector<2x32xf32>
    %c0_35 = arith.constant 0 : index
    %c0_36 = arith.constant 0 : index
    %c0_37 = arith.constant 0 : index
    %97 = vector.load %arg6[%c0_35, %c0_36, %c0_37] : memref<4x32x4xbf16, #tpu.memory_space<vmem>>, vector<4x32x4xbf16>
    %98 = arith.truncf %91 : vector<2x32xf32> to vector<2x32xbf16>
    %99 = vector.extract_strided_slice %97 {offsets = [0, 0, 0], sizes = [1, 32, 4], strides = [1, 1, 1]} : vector<4x32x4xbf16> to vector<1x32x4xbf16>
    %100 = vector.shape_cast %99 : vector<1x32x4xbf16> to vector<32x4xbf16>
    %cst_38 = arith.constant dense<0.000000e+00> : vector<2x4xf32>
    %101 = tpu.matmul %98, %100, %cst_38 {dimension_numbers = #tpu.dot_dimension_numbers<[1], [0], [0], [1], [0, 0, 1, 1], [], []>} : vector<2x32xbf16>, vector<32x4xbf16>, vector<2x4xf32> -> vector<2x4xf32>
    %102 = arith.truncf %94 : vector<2x32xf32> to vector<2x32xbf16>
    %103 = vector.extract_strided_slice %97 {offsets = [1, 0, 0], sizes = [1, 32, 4], strides = [1, 1, 1]} : vector<4x32x4xbf16> to vector<1x32x4xbf16>
    %104 = vector.shape_cast %103 : vector<1x32x4xbf16> to vector<32x4xbf16>
    %cst_39 = arith.constant dense<0.000000e+00> : vector<2x4xf32>
    %105 = tpu.matmul %102, %104, %cst_39 {dimension_numbers = #tpu.dot_dimension_numbers<[1], [0], [0], [1], [0, 0, 1, 1], [], []>} : vector<2x32xbf16>, vector<32x4xbf16>, vector<2x4xf32> -> vector<2x4xf32>
    %106 = arith.addf %101, %105 : vector<2x4xf32>
    %107 = arith.truncf %95 : vector<2x32xf32> to vector<2x32xbf16>
    %108 = vector.extract_strided_slice %97 {offsets = [2, 0, 0], sizes = [1, 32, 4], strides = [1, 1, 1]} : vector<4x32x4xbf16> to vector<1x32x4xbf16>
    %109 = vector.shape_cast %108 : vector<1x32x4xbf16> to vector<32x4xbf16>
    %cst_40 = arith.constant dense<0.000000e+00> : vector<2x4xf32>
    %110 = tpu.matmul %107, %109, %cst_40 {dimension_numbers = #tpu.dot_dimension_numbers<[1], [0], [0], [1], [0, 0, 1, 1], [], []>} : vector<2x32xbf16>, vector<32x4xbf16>, vector<2x4xf32> -> vector<2x4xf32>
    %111 = arith.addf %106, %110 : vector<2x4xf32>
    %112 = arith.truncf %96 : vector<2x32xf32> to vector<2x32xbf16>
    %113 = vector.extract_strided_slice %97 {offsets = [3, 0, 0], sizes = [1, 32, 4], strides = [1, 1, 1]} : vector<4x32x4xbf16> to vector<1x32x4xbf16>
    %114 = vector.shape_cast %113 : vector<1x32x4xbf16> to vector<32x4xbf16>
    %cst_41 = arith.constant dense<0.000000e+00> : vector<2x4xf32>
    %115 = tpu.matmul %112, %114, %cst_41 {dimension_numbers = #tpu.dot_dimension_numbers<[1], [0], [0], [1], [0, 0, 1, 1], [], []>} : vector<2x32xbf16>, vector<32x4xbf16>, vector<2x4xf32> -> vector<2x4xf32>
    %116 = arith.addf %111, %115 : vector<2x4xf32>
    %c0_42 = arith.constant 0 : index
    %c0_43 = arith.constant 0 : index
    %117 = vector.load %arg7[%c0_42, %c0_43] : memref<1x4xf32, #tpu.memory_space<vmem>>, vector<1x4xf32>
    %118 = vector.broadcast %117 : vector<1x4xf32> to vector<2x4xf32>
    %119 = arith.addf %116, %118 : vector<2x4xf32>
    %c0_44 = arith.constant 0 : index
    %c0_45 = arith.constant 0 : index
    %120 = vector.load %arg8[%c0_44, %c0_45] : memref<2x4xf32, #tpu.memory_space<vmem>>, vector<2x4xf32>
    tpu.vector_store %arg8[%c0_44, %c0_45], %119 {strides = array<i32>} : memref<2x4xf32, #tpu.memory_space<vmem>>, vector<2x4xf32>,
    return
  }
  func.func @transform_0(%arg0: i32) -> (i32, i32, i32) {
    %c0_i32 = arith.constant 0 : i32
    %c0_i32_0 = arith.constant 0 : i32
    %c0_i32_1 = arith.constant 0 : i32
    return %arg0, %c0_i32, %c0_i32_0 : i32, i32, i32
  }
  func.func @transform_1(%arg0: i32) -> (i32, i32) {
    %c0_i32 = arith.constant 0 : i32
    %c0_i32_0 = arith.constant 0 : i32
    %c0_i32_1 = arith.constant 0 : i32
    return %c0_i32, %c0_i32_0 : i32, i32
  }
  func.func @transform_2(%arg0: i32) -> (i32, i32) {
    %c0_i32 = arith.constant 0 : i32
    %c0_i32_0 = arith.constant 0 : i32
    %c0_i32_1 = arith.constant 0 : i32
    return %c0_i32, %c0_i32_0 : i32, i32
  }
  func.func @transform_3(%arg0: i32) -> (i32, i32) {
    %c0_i32 = arith.constant 0 : i32
    %c0_i32_0 = arith.constant 0 : i32
    %c0_i32_1 = arith.constant 0 : i32
    return %c0_i32, %c0_i32_0 : i32, i32
  }
  func.func @transform_4(%arg0: i32) -> (i32, i32) {
    %c0_i32 = arith.constant 0 : i32
    %c0_i32_0 = arith.constant 0 : i32
    %c0_i32_1 = arith.constant 0 : i32
    return %c0_i32, %c0_i32_0 : i32, i32
  }
  func.func @transform_5(%arg0: i32) -> (i32, i32, i32) {
    %c0_i32 = arith.constant 0 : i32
    %c0_i32_0 = arith.constant 0 : i32
    %c0_i32_1 = arith.constant 0 : i32
    %c0_i32_2 = arith.constant 0 : i32
    return %c0_i32, %c0_i32_0, %c0_i32_1 : i32, i32, i32
  }
  func.func @transform_6(%arg0: i32) -> (i32, i32) {
    %c0_i32 = arith.constant 0 : i32
    %c0_i32_0 = arith.constant 0 : i32
    %c0_i32_1 = arith.constant 0 : i32
    return %c0_i32, %c0_i32_0 : i32, i32
  }
  func.func @transform_7(%arg0: i32) -> (i32, i32) {
    %c0_i32 = arith.constant 0 : i32
    %c0_i32_0 = arith.constant 0 : i32
    return %arg0, %c0_i32 : i32, i32
  }
}

module attributes {stable_mosaic.version = 11 : i64} {
  func.func @self_attention_kernel(%arg0: i32, %arg1: memref<2x8x32xbf16, #tpu.memory_space<vmem>>, %arg2: memref<32x96xbf16, #tpu.memory_space<vmem>>, %arg3: memref<1x96xf32, #tpu.memory_space<vmem>>, %arg4: memref<1x32xf32, #tpu.memory_space<vmem>>, %arg5: memref<1x1xf32, #tpu.memory_space<vmem>>, %arg6: memref<4x32x4xbf16, #tpu.memory_space<vmem>>, %arg7: memref<1x4xf32, #tpu.memory_space<vmem>>, %arg8: memref<2x4xf32, #tpu.memory_space<vmem>>) attributes {dimension_semantics = [#tpu.dimension_semantics<parallel>], iteration_bounds = array<i64: 1>, scalar_prefetch = 0 : i64, scratch_operands = 0 : i64, tpu.core_type = #tpu.core_type<tc>, window_params = [{transform_indices = @transform_0, window_bounds = array<i64: 2, 8, 32>}, {pipeline_mode = #tpu.pipeline_mode<synchronous>, transform_indices = @transform_1, window_bounds = array<i64: 32, 96>}, {pipeline_mode = #tpu.pipeline_mode<synchronous>, transform_indices = @transform_2, window_bounds = array<i64: 1, 96>}, {pipeline_mode = #tpu.pipeline_mode<synchronous>, transform_indices = @transform_3, window_bounds = array<i64: 1, 32>}, {pipeline_mode = #tpu.pipeline_mode<synchronous>, transform_indices = @transform_4, window_bounds = array<i64: 1, 1>}, {pipeline_mode = #tpu.pipeline_mode<synchronous>, transform_indices = @transform_5, window_bounds = array<i64: 4, 32, 4>}, {pipeline_mode = #tpu.pipeline_mode<synchronous>, transform_indices = @transform_6, window_bounds = array<i64: 1, 4>}, {transform_indices = @transform_7, window_bounds = array<i64: 2, 4>}]} {
    %c0 = arith.constant 0 : index
    %c0_0 = arith.constant 0 : index
    %c0_1 = arith.constant 0 : index
    %0 = vector.load %arg1[%c0, %c0_0, %c0_1] : memref<2x8x32xbf16, #tpu.memory_space<vmem>>, vector<2x8x32xbf16>
    %1 = arith.extf %0 : vector<2x8x32xbf16> to vector<2x8x32xf32>
    %c0_2 = arith.constant 0 : index
    %c0_3 = arith.constant 0 : index
    %2 = vector.load %arg2[%c0_2, %c0_3] : memref<32x96xbf16, #tpu.memory_space<vmem>>, vector<32x96xbf16>
    %c0_4 = arith.constant 0 : index
    %c0_5 = arith.constant 0 : index
    %3 = vector.load %arg3[%c0_4, %c0_5] : memref<1x96xf32, #tpu.memory_space<vmem>>, vector<1x96xf32>
    %4 = vector.shape_cast %3 : vector<1x96xf32> to vector<1x96xf32>
    %5 = vector.broadcast %4 : vector<1x96xf32> to vector<16x96xf32>
    %6 = vector.shape_cast %0 : vector<2x8x32xbf16> to vector<16x32xbf16>
    %cst = arith.constant dense<0.000000e+00> : vector<16x96xf32>
    %7 = tpu.matmul %6, %2, %cst {dimension_numbers = #tpu.dot_dimension_numbers<[1], [0], [0], [1], [0, 0, 1, 1], [], []>} : vector<16x32xbf16>, vector<32x96xbf16>, vector<16x96xf32> -> vector<16x96xf32>
    %8 = arith.addf %7, %5 : vector<16x96xf32>
    %9 = vector.shape_cast %8 : vector<16x96xf32> to vector<2x8x96xf32>
    %10 = vector.extract_strided_slice %9 {offsets = [0, 0, 0], sizes = [2, 8, 32], strides = [1, 1, 1]} : vector<2x8x96xf32> to vector<2x8x32xf32>
    %11 = vector.extract_strided_slice %9 {offsets = [0, 0, 32], sizes = [2, 8, 32], strides = [1, 1, 1]} : vector<2x8x96xf32> to vector<2x8x32xf32>
    %12 = vector.extract_strided_slice %9 {offsets = [0, 0, 64], sizes = [2, 8, 32], strides = [1, 1, 1]} : vector<2x8x96xf32> to vector<2x8x32xf32>
    %13 = arith.truncf %12 : vector<2x8x32xf32> to vector<2x8x32xbf16>
    %14 = arith.truncf %11 : vector<2x8x32xf32> to vector<2x8x32xbf16>
    %15 = arith.truncf %10 : vector<2x8x32xf32> to vector<2x8x32xbf16>
    "tpu.trace_start"() <{level = 10 : i32, message = "bqh,bkh->bqk"}> : () -> ()
    %cst_6 = arith.constant dense<0.000000e+00> : vector<2x8x8xf32>
    %16 = tpu.matmul %14, %15, %cst_6 {dimension_numbers = #tpu.dot_dimension_numbers<[2], [2], [1], [1], [0, 0, 0, 1, 1, 1], [0], [0]>} : vector<2x8x32xbf16>, vector<2x8x32xbf16>, vector<2x8x8xf32> -> vector<2x8x8xf32>
    "tpu.trace_stop"() : () -> ()
    %cst_7 = arith.constant 0.176776692 : f32
    %17 = vector.broadcast %cst_7 : f32 to vector<2x8x8xf32>
    %18 = arith.mulf %16, %17 : vector<2x8x8xf32>
    %cst_8 = arith.constant dense<0xFF800000> : vector<2x8xf32>
    %19 = vector.multi_reduction <maximumf>, %18, %cst_8 [2] : vector<2x8x8xf32> to vector<2x8xf32>
    %20 = vector.shape_cast %19 : vector<2x8xf32> to vector<2x8x1xf32>
    %21 = vector.broadcast %20 : vector<2x8x1xf32> to vector<2x8x8xf32>
    %22 = arith.subf %18, %21 : vector<2x8x8xf32>
    %23 = math.exp %22 : vector<2x8x8xf32>
    %cst_9 = arith.constant dense<0.000000e+00> : vector<2x8xf32>
    %24 = vector.multi_reduction <add>, %23, %cst_9 [2] : vector<2x8x8xf32> to vector<2x8xf32>
    %25 = vector.shape_cast %24 : vector<2x8xf32> to vector<2x8x1xf32>
    %26 = tpu.reciprocal %25 {approx = true} : vector<2x8x1xf32> -> vector<2x8x1xf32>
    %27 = vector.broadcast %26 : vector<2x8x1xf32> to vector<2x8x8xf32>
    %28 = arith.mulf %23, %27 : vector<2x8x8xf32>
    %29 = arith.truncf %28 : vector<2x8x8xf32> to vector<2x8x8xbf16>
    "tpu.trace_start"() <{level = 10 : i32, message = "bqk,bkh->bqh"}> : () -> ()
    %cst_10 = arith.constant dense<0.000000e+00> : vector<2x8x32xf32>
    %30 = tpu.matmul %29, %13, %cst_10 {dimension_numbers = #tpu.dot_dimension_numbers<[2], [1], [1], [2], [0, 0, 0, 1, 1, 2], [0], [0]>} : vector<2x8x8xbf16>, vector<2x8x32xbf16>, vector<2x8x32xf32> -> vector<2x8x32xf32>
    "tpu.trace_stop"() : () -> ()
    %cst_11 = arith.constant dense<0.000000e+00> : vector<2x8xf32>
    %31 = vector.multi_reduction <add>, %30, %cst_11 [2] : vector<2x8x32xf32> to vector<2x8xf32>
    %32 = vector.shape_cast %31 : vector<2x8xf32> to vector<2x8x1xf32>
    %cst_12 = arith.constant dense<0.000000e+00> : vector<2x1xf32>
    %33 = vector.multi_reduction <add>, %32, %cst_12 [1] : vector<2x8x1xf32> to vector<2x1xf32>
    %34 = vector.shape_cast %33 : vector<2x1xf32> to vector<2x1x1xf32>
    %cst_13 = arith.constant 3.906250e-03 : f32
    %35 = vector.broadcast %cst_13 : f32 to vector<2x1x1xf32>
    %36 = arith.mulf %34, %35 : vector<2x1x1xf32>
    %37 = vector.broadcast %36 : vector<2x1x1xf32> to vector<2x8x32xf32>
    %38 = arith.subf %30, %37 : vector<2x8x32xf32>
    %39 = arith.mulf %38, %38 : vector<2x8x32xf32>
    %cst_14 = arith.constant dense<0.000000e+00> : vector<2x8xf32>
    %40 = vector.multi_reduction <add>, %39, %cst_14 [2] : vector<2x8x32xf32> to vector<2x8xf32>
    %41 = vector.shape_cast %40 : vector<2x8xf32> to vector<2x8x1xf32>
    %cst_15 = arith.constant dense<0.000000e+00> : vector<2x1xf32>
    %42 = vector.multi_reduction <add>, %41, %cst_15 [1] : vector<2x8x1xf32> to vector<2x1xf32>
    %43 = vector.shape_cast %42 : vector<2x1xf32> to vector<2x1x1xf32>
    %cst_16 = arith.constant 3.906250e-03 : f32
    %44 = vector.broadcast %cst_16 : f32 to vector<2x1x1xf32>
    %45 = arith.mulf %43, %44 : vector<2x1x1xf32>
    %cst_17 = arith.constant 9.99999993E-9 : f32
    %46 = vector.broadcast %cst_17 : f32 to vector<2x1x1xf32>
    %47 = arith.addf %45, %46 : vector<2x1x1xf32>
    %48 = math.rsqrt %47 : vector<2x1x1xf32>
    %49 = vector.broadcast %48 : vector<2x1x1xf32> to vector<2x8x32xf32>
    %50 = arith.mulf %38, %49 : vector<2x8x32xf32>
    %51 = arith.truncf %50 : vector<2x8x32xf32> to vector<2x8x32xbf16>
    %52 = vector.shape_cast %51 : vector<2x8x32xbf16> to vector<16x32xbf16>
    %cst_18 = arith.constant dense<0.000000e+00> : vector<16x96xf32>
    %53 = tpu.matmul %52, %2, %cst_18 {dimension_numbers = #tpu.dot_dimension_numbers<[1], [0], [0], [1], [0, 0, 1, 1], [], []>} : vector<16x32xbf16>, vector<32x96xbf16>, vector<16x96xf32> -> vector<16x96xf32>
    %54 = arith.addf %53, %5 : vector<16x96xf32>
    %55 = vector.shape_cast %54 : vector<16x96xf32> to vector<2x8x96xf32>
    %56 = vector.extract_strided_slice %55 {offsets = [0, 0, 0], sizes = [2, 8, 32], strides = [1, 1, 1]} : vector<2x8x96xf32> to vector<2x8x32xf32>
    %57 = vector.extract_strided_slice %55 {offsets = [0, 0, 32], sizes = [2, 8, 32], strides = [1, 1, 1]} : vector<2x8x96xf32> to vector<2x8x32xf32>
    %58 = vector.extract_strided_slice %55 {offsets = [0, 0, 64], sizes = [2, 8, 32], strides = [1, 1, 1]} : vector<2x8x96xf32> to vector<2x8x32xf32>
    %59 = arith.truncf %57 : vector<2x8x32xf32> to vector<2x8x32xbf16>
    %60 = arith.truncf %56 : vector<2x8x32xf32> to vector<2x8x32xbf16>
    "tpu.trace_start"() <{level = 10 : i32, message = "bsh,bsg->bhg"}> : () -> ()
    %cst_19 = arith.constant dense<0.000000e+00> : vector<2x32x32xf32>
    %61 = tpu.matmul %59, %60, %cst_19 {dimension_numbers = #tpu.dot_dimension_numbers<[1], [1], [2], [2], [0, 0, 0, 2, 1, 2], [0], [0]>} : vector<2x8x32xbf16>, vector<2x8x32xbf16>, vector<2x32x32xf32> -> vector<2x32x32xf32>
    "tpu.trace_stop"() : () -> ()
    %cst_20 = arith.constant 0.176776692 : f32
    %62 = vector.broadcast %cst_20 : f32 to vector<2x32x32xf32>
    %63 = arith.mulf %61, %62 : vector<2x32x32xf32>
    %cst_21 = arith.constant dense<0xFF800000> : vector<2x32xf32>
    %64 = vector.multi_reduction <maximumf>, %63, %cst_21 [2] : vector<2x32x32xf32> to vector<2x32xf32>
    %65 = vector.shape_cast %64 : vector<2x32xf32> to vector<2x32x1xf32>
    %66 = vector.broadcast %65 : vector<2x32x1xf32> to vector<2x32x32xf32>
    %67 = arith.subf %63, %66 : vector<2x32x32xf32>
    %68 = math.exp %67 : vector<2x32x32xf32>
    %cst_22 = arith.constant dense<0.000000e+00> : vector<2x32xf32>
    %69 = vector.multi_reduction <add>, %68, %cst_22 [2] : vector<2x32x32xf32> to vector<2x32xf32>
    %70 = vector.shape_cast %69 : vector<2x32xf32> to vector<2x32x1xf32>
    %71 = tpu.reciprocal %70 {approx = true} : vector<2x32x1xf32> -> vector<2x32x1xf32>
    %72 = vector.broadcast %71 : vector<2x32x1xf32> to vector<2x32x32xf32>
    %73 = arith.mulf %68, %72 : vector<2x32x32xf32>
    %74 = arith.truncf %58 : vector<2x8x32xf32> to vector<2x8x32xbf16>
    %75 = arith.truncf %73 : vector<2x32x32xf32> to vector<2x32x32xbf16>
    "tpu.trace_start"() <{level = 10 : i32, message = "bsh,bhg->bsg"}> : () -> ()
    %cst_23 = arith.constant dense<0.000000e+00> : vector<2x8x32xf32>
    %76 = tpu.matmul %74, %75, %cst_23 {dimension_numbers = #tpu.dot_dimension_numbers<[2], [1], [1], [2], [0, 0, 0, 1, 1, 2], [0], [0]>} : vector<2x8x32xbf16>, vector<2x32x32xbf16>, vector<2x8x32xf32> -> vector<2x8x32xf32>
    "tpu.trace_stop"() : () -> ()
    %c0_24 = arith.constant 0 : index
    %c0_25 = arith.constant 0 : index
    %77 = vector.load %arg4[%c0_24, %c0_25] : memref<1x32xf32, #tpu.memory_space<vmem>>, vector<1x32xf32>
    %78 = vector.shape_cast %77 : vector<1x32xf32> to vector<1x1x32xf32>
    %79 = vector.broadcast %78 : vector<1x1x32xf32> to vector<2x8x32xf32>
    %80 = arith.mulf %76, %79 : vector<2x8x32xf32>
    %cst_26 = arith.constant dense<0.000000e+00> : vector<2x8xf32>
    %81 = vector.multi_reduction <add>, %80, %cst_26 [2] : vector<2x8x32xf32> to vector<2x8xf32>
    %82 = vector.shape_cast %81 : vector<2x8xf32> to vector<2x8x1xf32>
    %c0_27 = arith.constant 0 : index
    %c0_28 = arith.constant 0 : index
    %83 = vector.load %arg5[%c0_27, %c0_28] : memref<1x1xf32, #tpu.memory_space<vmem>>, vector<1x1xf32>
    %84 = vector.shape_cast %83 : vector<1x1xf32> to vector<1x1x1xf32>
    %85 = vector.broadcast %84 : vector<1x1x1xf32> to vector<2x8x1xf32>
    %86 = arith.addf %82, %85 : vector<2x8x1xf32>
    %87 = vector.broadcast %86 : vector<2x8x1xf32> to vector<2x8x32xf32>
    %88 = arith.mulf %87, %76 : vector<2x8x32xf32>
    %cst_29 = arith.constant dense<0.000000e+00> : vector<2x32xf32>
    %89 = vector.multi_reduction <add>, %1, %cst_29 [1] : vector<2x8x32xf32> to vector<2x32xf32>
    %cst_30 = arith.constant 1.250000e-01 : f32
    %90 = vector.broadcast %cst_30 : f32 to vector<2x32xf32>
    %91 = arith.mulf %89, %90 : vector<2x32xf32>
    %cst_31 = arith.constant dense<0.000000e+00> : vector<2x32xf32>
    %92 = vector.multi_reduction <add>, %88, %cst_31 [1] : vector<2x8x32xf32> to vector<2x32xf32>
    %cst_32 = arith.constant 1.250000e-01 : f32
    %93 = vector.broadcast %cst_32 : f32 to vector<2x32xf32>
    %94 = arith.mulf %92, %93 : vector<2x32xf32>
    %cst_33 = arith.constant dense<0xFF800000> : vector<2x32xf32>
    %95 = vector.multi_reduction <maximumf>, %1, %cst_33 [1] : vector<2x8x32xf32> to vector<2x32xf32>
    %cst_34 = arith.constant dense<0xFF800000> : vector<2x32xf32>
    %96 = vector.multi_reduction <maximumf>, %88, %cst_34 [1] : vector<2x8x32xf32> to vector<2x32xf32>
    %c0_35 = arith.constant 0 : index
    %c0_36 = arith.constant 0 : index
    %c0_37 = arith.constant 0 : index
    %97 = vector.load %arg6[%c0_35, %c0_36, %c0_37] : memref<4x32x4xbf16, #tpu.memory_space<vmem>>, vector<4x32x4xbf16>
    %98 = arith.truncf %91 : vector<2x32xf32> to vector<2x32xbf16>
    %99 = vector.extract_strided_slice %97 {offsets = [0, 0, 0], sizes = [1, 32, 4], strides = [1, 1, 1]} : vector<4x32x4xbf16> to vector<1x32x4xbf16>
    %100 = vector.shape_cast %99 : vector<1x32x4xbf16> to vector<32x4xbf16>
    %cst_38 = arith.constant dense<0.000000e+00> : vector<2x4xf32>
    %101 = tpu.matmul %98, %100, %cst_38 {dimension_numbers = #tpu.dot_dimension_numbers<[1], [0], [0], [1], [0, 0, 1, 1], [], []>} : vector<2x32xbf16>, vector<32x4xbf16>, vector<2x4xf32> -> vector<2x4xf32>
    %102 = arith.truncf %94 : vector<2x32xf32> to vector<2x32xbf16>
    %103 = vector.extract_strided_slice %97 {offsets = [1, 0, 0], sizes = [1, 32, 4], strides = [1, 1, 1]} : vector<4x32x4xbf16> to vector<1x32x4xbf16>
    %104 = vector.shape_cast %103 : vector<1x32x4xbf16> to vector<32x4xbf16>
    %cst_39 = arith.constant dense<0.000000e+00> : vector<2x4xf32>
    %105 = tpu.matmul %102, %104, %cst_39 {dimension_numbers = #tpu.dot_dimension_numbers<[1], [0], [0], [1], [0, 0, 1, 1], [], []>} : vector<2x32xbf16>, vector<32x4xbf16>, vector<2x4xf32> -> vector<2x4xf32>
    %106 = arith.addf %101, %105 : vector<2x4xf32>
    %107 = arith.truncf %95 : vector<2x32xf32> to vector<2x32xbf16>
    %108 = vector.extract_strided_slice %97 {offsets = [2, 0, 0], sizes = [1, 32, 4], strides = [1, 1, 1]} : vector<4x32x4xbf16> to vector<1x32x4xbf16>
    %109 = vector.shape_cast %108 : vector<1x32x4xbf16> to vector<32x4xbf16>
    %cst_40 = arith.constant dense<0.000000e+00> : vector<2x4xf32>
    %110 = tpu.matmul %107, %109, %cst_40 {dimension_numbers = #tpu.dot_dimension_numbers<[1], [0], [0], [1], [0, 0, 1, 1], [], []>} : vector<2x32xbf16>, vector<32x4xbf16>, vector<2x4xf32> -> vector<2x4xf32>
    %111 = arith.addf %106, %110 : vector<2x4xf32>
    %112 = arith.truncf %96 : vector<2x32xf32> to vector<2x32xbf16>
    %113 = vector.extract_strided_slice %97 {offsets = [3, 0, 0], sizes = [1, 32, 4], strides = [1, 1, 1]} : vector<4x32x4xbf16> to vector<1x32x4xbf16>
    %114 = vector.shape_cast %113 : vector<1x32x4xbf16> to vector<32x4xbf16>
    %cst_41 = arith.constant dense<0.000000e+00> : vector<2x4xf32>
    %115 = tpu.matmul %112, %114, %cst_41 {dimension_numbers = #tpu.dot_dimension_numbers<[1], [0], [0], [1], [0, 0, 1, 1], [], []>} : vector<2x32xbf16>, vector<32x4xbf16>, vector<2x4xf32> -> vector<2x4xf32>
    %116 = arith.addf %111, %115 : vector<2x4xf32>
    %c0_42 = arith.constant 0 : index
    %c0_43 = arith.constant 0 : index
    %117 = vector.load %arg7[%c0_42, %c0_43] : memref<1x4xf32, #tpu.memory_space<vmem>>, vector<1x4xf32>
    %118 = vector.broadcast %117 : vector<1x4xf32> to vector<2x4xf32>
    %119 = arith.addf %116, %118 : vector<2x4xf32>
    %c0_44 = arith.constant 0 : index
    %c0_45 = arith.constant 0 : index
    %120 = vector.load %arg8[%c0_44, %c0_45] : memref<2x4xf32, #tpu.memory_space<vmem>>, vector<2x4xf32>
    tpu.vector_store %arg8[%c0_44, %c0_45], %119 {strides = array<i32>} : memref<2x4xf32, #tpu.memory_space<vmem>>, vector<2x4xf32>,
    return
  }
  func.func @transform_0(%arg0: i32) -> (i32, i32, i32) {
    %c0_i32 = arith.constant 0 : i32
    %c0_i32_0 = arith.constant 0 : i32
    %c0_i32_1 = arith.constant 0 : i32
    return %arg0, %c0_i32, %c0_i32_0 : i32, i32, i32
  }
  func.func @transform_1(%arg0: i32) -> (i32, i32) {
    %c0_i32 = arith.constant 0 : i32
    %c0_i32_0 = arith.constant 0 : i32
    %c0_i32_1 = arith.constant 0 : i32
    return %c0_i32, %c0_i32_0 : i32, i32
  }
  func.func @transform_2(%arg0: i32) -> (i32, i32) {
    %c0_i32 = arith.constant 0 : i32
    %c0_i32_0 = arith.constant 0 : i32
    %c0_i32_1 = arith.constant 0 : i32
    return %c0_i32, %c0_i32_0 : i32, i32
  }
  func.func @transform_3(%arg0: i32) -> (i32, i32) {
    %c0_i32 = arith.constant 0 : i32
    %c0_i32_0 = arith.constant 0 : i32
    %c0_i32_1 = arith.constant 0 : i32
    return %c0_i32, %c0_i32_0 : i32, i32
  }
  func.func @transform_4(%arg0: i32) -> (i32, i32) {
    %c0_i32 = arith.constant 0 : i32
    %c0_i32_0 = arith.constant 0 : i32
    %c0_i32_1 = arith.constant 0 : i32
    return %c0_i32, %c0_i32_0 : i32, i32
  }
  func.func @transform_5(%arg0: i32) -> (i32, i32, i32) {
    %c0_i32 = arith.constant 0 : i32
    %c0_i32_0 = arith.constant 0 : i32
    %c0_i32_1 = arith.constant 0 : i32
    %c0_i32_2 = arith.constant 0 : i32
    return %c0_i32, %c0_i32_0, %c0_i32_1 : i32, i32, i32
  }
  func.func @transform_6(%arg0: i32) -> (i32, i32) {
    %c0_i32 = arith.constant 0 : i32
    %c0_i32_0 = arith.constant 0 : i32
    %c0_i32_1 = arith.constant 0 : i32
    return %c0_i32, %c0_i32_0 : i32, i32
  }
  func.func @transform_7(%arg0: i32) -> (i32, i32) {
    %c0_i32 = arith.constant 0 : i32
    %c0_i32_0 = arith.constant 0 : i32
    return %arg0, %c0_i32 : i32, i32
  }
}

</mosaic_0001>

<llo_original>
// kernel: tpu_custom_call.1
$region0: #{tpu_custom_call.1}
  #allocation0 [shape = 'u32[]', space=smem, size = 0x4, offset = 0x4, fixed_abs, tag = 'smem constant byte address 0x4 - core index']
  #allocation1 [shape = 'u32[72,128]{1,0:T(1,128)}', space=vmem, size = 0x9000, scoped, tag = 'internal scratch']
  #allocation2 [shape = 'f32[1,1]{1,0:T(1,128)S(1)}', space=vmem, size = 0x200, scoped, tag = 'scoped memory for tpu_custom_call.1']
  %s0 = inlined_call_operand.vmem [shape: bf16[2,8,32], index: 0, kind: input, shape index: {}]
  %s1 = inlined_call_operand.vmem [shape: bf16[32,96], index: 1, kind: input, shape index: {}]
  %s2 = inlined_call_operand.vmem [shape: f32[1,96], index: 2, kind: input, shape index: {}]
  %s3 = inlined_call_operand.vmem [shape: f32[1,32], index: 3, kind: input, shape index: {}]
  %s4 = inlined_call_operand.<no memory space> [shape: f32[1,1], index: 4, kind: input, shape index: {}]
  %s5 = inlined_call_operand.vmem [shape: bf16[4,32,4], index: 5, kind: input, shape index: {}]
  %s6 = inlined_call_operand.vmem [shape: f32[1,4], index: 6, kind: input, shape index: {}]
  %s7 = inlined_call_operand.hbm [shape: f32[2,4], index: 7, kind: output, shape index: {}]
  %s8 = sld [smem:[#allocation0]]
  $region38: #{tpu_custom_call.1} parent=0
    _
  %s10 = ssub.s32 1, %s8
  %s11 = scalar_select 0, %s10, %s8
  %v12 = vstv %s4
  %13 = vst [vmem:[#allocation2] sm:$0x1] %v12
  $region1: #{tpu_custom_call.1} parent=0
    #allocation3 [shape = 'u8[1024]{0}', space=vmem, size = 0x400, scoped, tag = 'output window, operand 0, single buffered']
    #allocation4 [shape = 's32[1]{0}', space=sflag, size = 0x4, scoped, tag = 'scoped memory for tpu_custom_call.1']
    %14 = vsyncpa [#allocation4], 0
    // Predicated region
    $region2: #{tpu_custom_call.1} parent=1 // pred_check
      _
    $region3: #{tpu_custom_call.1} parent=1 // pred_check_branch
      %16 = sbr.rel (0) target = $region5
    $region4: #{tpu_custom_call.1} parent=1 // pred_region
      _
    $region5: #{tpu_custom_call.1} parent=1 // pred_fallthru
      _
    // Predicated region
    $region6: #{tpu_custom_call.1} parent=1 // pred_check
      _
    $region7: #{tpu_custom_call.1} parent=1 // pred_check_branch
      %18 = sbr.rel (0) target = $region9
    $region8: #{tpu_custom_call.1} parent=1 // pred_region
      _
    $region9: #{tpu_custom_call.1} parent=1 // pred_fallthru
      _
    // Predicated region
    $region10: #{tpu_custom_call.1} parent=1 // pred_check
      _
    $region11: #{tpu_custom_call.1} parent=1 // pred_check_branch
      %20 = sbr.rel (0) target = $region13
    $region12: #{tpu_custom_call.1} parent=1 // pred_region
      _
    $region13: #{tpu_custom_call.1} parent=1 // pred_fallthru
      _
    // Predicated region
    $region14: #{tpu_custom_call.1} parent=1 // pred_check
      _
    $region15: #{tpu_custom_call.1} parent=1 // pred_check_branch
      %22 = sbr.rel (0) target = $region17
    $region16: #{tpu_custom_call.1} parent=1 // pred_region
      _
    $region17: #{tpu_custom_call.1} parent=1 // pred_fallthru
      _
    // Predicated region
    $region18: #{tpu_custom_call.1} parent=1 // pred_check
      _
    $region19: #{tpu_custom_call.1} parent=1 // pred_check_branch
      %24 = sbr.rel (0) target = $region21
    $region20: #{tpu_custom_call.1} parent=1 // pred_region
      _
    $region21: #{tpu_custom_call.1} parent=1 // pred_fallthru
      _
    // Predicated region
    $region22: #{tpu_custom_call.1} parent=1 // pred_check
      _
    $region23: #{tpu_custom_call.1} parent=1 // pred_check_branch
      %26 = sbr.rel (0) target = $region25
    $region24: #{tpu_custom_call.1} parent=1 // pred_region
      _
    $region25: #{tpu_custom_call.1} parent=1 // pred_fallthru
      _
    // Predicated region
    $region26: #{tpu_custom_call.1} parent=1 // pred_check
      _
    $region27: #{tpu_custom_call.1} parent=1 // pred_check_branch
      %28 = sbr.rel (0) target = $region29
    $region28: #{tpu_custom_call.1} parent=1 // pred_region
      _
    $region29: #{tpu_custom_call.1} parent=1 // pred_fallthru
      _
    %v30 = vld [vmem:[%s0] sm:$0xf]
    %v31 = vld [vmem:[%s0 + $0x4] sm:$0xf]
    %v32 = vunpack.c.l.bf16 %v30
    %v33 = vunpack.c.l.bf16 %v31
    %v34 = vld [vmem:[%s1] sm:$0xf]
    %v35 = vld [vmem:[%s1 + $0x4] sm:$0xf]
    %v36 = vld [vmem:[%s1 + $0x8] sm:$0xf]
    %v37 = vld [vmem:[%s1 + $0xc] sm:$0xf]
    %v38 = vld [vmem:[%s2] sm:$0x1]
    %v40 = vperm.slane %v38, 0
    %v44 = vunpack.c.l.b16 %v30
    %v45 = vunpack.c.l.b16 %v31
    %v46 = vpack.c.b16 %v45, %v44
    %v51 = vunpack.c.l.b16 %v34
    %v52 = vunpack.c.l.b16 %v35
    %v53 = vunpack.c.l.b16 %v36
    %v54 = vunpack.c.l.b16 %v37
    %v55 = vpack.c.b16 %v52, %v51
    %v56 = vpack.c.b16 %v54, %v53
    %vm59 = vcmask 261120
    %v61 = vsel %vm59, %v46, 0
    %63 = vmatpush.bf16.msra.mxu0 0
    %64 = vmatpush.bf16.msra.mxu0 0
    %65 = vmatpush.bf16.msra.mxu0 0
    %66 = vmatpush.bf16.msra.mxu0 0
    %67 = vmatpush.bf16.msra.mxu0 0
    %68 = vmatpush.bf16.msra.mxu0 0
    %69 = vmatpush.bf16.msra.mxu0 %v56
    %70 = vmatpush.bf16.msra.mxu0 %v55
    %71 = vmatmul.bf16.gmra.mxu0 %v61
    %v72 = vpop.f32.mrf.mxu0
    %v73 = vadd.f32 %v40, %v72
    %v74 = vpop.f32.mrf.mxu0
    %v75 = vadd.f32 %v40, %v74
    %76 = vdwg.mxu0
    %v77 = vpack.c.bf16 %v73, %v73
    %v78 = vpack.c.bf16 %v75, %v75
    %v80 = vunpack.c.l.b16 %v77
    %v81 = vpack.c.b16 %v80, %v80
    %82 = vrot.lane.b32.xlu0 %v81, 96
    %v83 = vpop.permute.xlu0 %82
    %v85 = vsel %vm59, %v83, 0
    %v88 = vsel %vm59, %v77, 0
    %90 = vmatpush.bf16.xpose.msra.mxu0 0
    %91 = vmatpush.bf16.xpose.msra.mxu0 0
    %92 = vmatpush.bf16.xpose.msra.mxu0 0
    %93 = vmatpush.bf16.xpose.msra.mxu0 0
    %94 = vmatpush.bf16.xpose.msra.mxu0 0
    %95 = vmatpush.bf16.xpose.msra.mxu0 0
    %96 = vmatpush.bf16.xpose.msra.mxu0 0
    %97 = vmatpush.bf16.xpose.msra.mxu0 %v88
    %98 = vmatmul.bf16.gmra.mxu0 %v85
    %v99 = vpop.f32.mrf.mxu0
    %v100 = vadd.f32 0.0, %v99
    %v101 = vpop.f32.mrf.mxu0
    %102 = vdwg.mxu0
    %v104 = vunpack.c.l.b16 %v78
    %v105 = vpack.c.b16 %v104, %v104
    %106 = vrot.lane.b32.xlu0 %v105, 96
    %v107 = vpop.permute.xlu0 %106
    %v109 = vsel %vm59, %v107, 0
    %v112 = vsel %vm59, %v78, 0
    %114 = vmatpush.bf16.xpose.msra.mxu0 0
    %115 = vmatpush.bf16.xpose.msra.mxu0 0
    %116 = vmatpush.bf16.xpose.msra.mxu0 0
    %117 = vmatpush.bf16.xpose.msra.mxu0 0
    %118 = vmatpush.bf16.xpose.msra.mxu0 0
    %119 = vmatpush.bf16.xpose.msra.mxu0 0
    %120 = vmatpush.bf16.xpose.msra.mxu0 0
    %121 = vmatpush.bf16.xpose.msra.mxu0 %v112
    %122 = vmatmul.bf16.gmra.mxu0 %v109
    %v123 = vpop.f32.mrf.mxu0
    %v124 = vadd.f32 0.0, %v123
    %v125 = vpop.f32.mrf.mxu0
    %126 = vdwg.mxu0
    %v127 = vmul.f32 %v100, 0.17677669
    %v128 = vmul.f32 %v124, 0.17677669
    %vm129 = vcmask 64512
    %v130 = vsel %vm129, %v127, -inf
    %131 = vmax.xlane.f32.xlu0 %v130
    %v132 = vpop.xlane.xlu0 %131
    %v133 = vsel %vm129, %v128, -inf
    %134 = vmax.xlane.f32.xlu0 %v133
    %v135 = vpop.xlane.xlu0 %134
    %v136 = vsub.f32 %v127, %v132
    %v137 = vsub.f32 %v128, %v135
    %v138 = vmul.f32 %v136, 1.442695
    %v139 = vpow.pop %v138
    %v140 = vmul.f32 %v137, 1.442695
    %v141 = vpow.pop %v140
    %v142 = vsel %vm129, %v139, 0.0
    %143 = vadd.xlane.f32.xlu0 %v142
    %v144 = vpop.xlane.xlu0 %143
    %v145 = vsel %vm129, %v141, 0.0
    %146 = vadd.xlane.f32.xlu0 %v145
    %v147 = vpop.xlane.xlu0 %146
    %v148 = vrcp.pop %v144
    %v149 = vrcp.pop %v147
    %v150 = vmul.f32 %v139, %v148
    %v151 = vmul.f32 %v141, %v149
    %v152 = vpack.c.bf16 %v150, %v150
    %v153 = vpack.c.bf16 %v151, %v151
    %154 = vrot.lane.b32.xlu0 %v81, 64
    %v155 = vpop.permute.xlu0 %154
    %v157 = vsel %vm129, %v152, 0
    %vm159 = vcmask 1043456
    %v161 = vsel %vm159, %v155, 0
    %163 = vmatpush.bf16.msra.mxu0 0
    %164 = vmatpush.bf16.msra.mxu0 0
    %165 = vmatpush.bf16.msra.mxu0 0
    %166 = vmatpush.bf16.msra.mxu0 0
    %167 = vmatpush.bf16.msra.mxu0 0
    %168 = vmatpush.bf16.msra.mxu0 0
    %169 = vmatpush.bf16.msra.mxu0 0
    %170 = vmatpush.bf16.msra.mxu0 %v161
    %171 = vmatmul.bf16.gmra.mxu0 %v157
    %v172 = vpop.f32.mrf.mxu0
    %v173 = vadd.f32 0.0, %v172
    %v174 = vpop.f32.mrf.mxu0
    %175 = vdwg.mxu0
    %176 = vrot.lane.b32.xlu0 %v105, 64
    %v177 = vpop.permute.xlu0 %176
    %v179 = vsel %vm129, %v153, 0
    %v182 = vsel %vm159, %v177, 0
    %184 = vmatpush.bf16.msra.mxu0 0
    %185 = vmatpush.bf16.msra.mxu0 0
    %186 = vmatpush.bf16.msra.mxu0 0
    %187 = vmatpush.bf16.msra.mxu0 0
    %188 = vmatpush.bf16.msra.mxu0 0
    %189 = vmatpush.bf16.msra.mxu0 0
    %190 = vmatpush.bf16.msra.mxu0 0
    %191 = vmatpush.bf16.msra.mxu0 %v182
    %192 = vmatmul.bf16.gmra.mxu0 %v179
    %v193 = vpop.f32.mrf.mxu0
    %v194 = vadd.f32 0.0, %v193
    %v195 = vpop.f32.mrf.mxu0
    %196 = vdwg.mxu0
    %v197 = vsel %vm59, %v173, 0.0
    %198 = vadd.xlane.f32.xlu0 %v197
    %v199 = vpop.xlane.xlu0 %198
    %v200 = vsel %vm59, %v194, 0.0
    %201 = vadd.xlane.f32.xlu0 %v200
    %v202 = vpop.xlane.xlu0 %201
    %v203 = vrot.slane %v199, 4
    %v204 = vadd.f32 %v199, %v203
    %v205 = vrot.slane %v204, 2
    %v206 = vadd.f32 %v204, %v205
    %v207 = vrot.slane %v206, 1
    %v208 = vadd.f32 %v206, %v207
    %v209 = vrot.slane %v202, 4
    %v210 = vadd.f32 %v202, %v209
    %v211 = vrot.slane %v210, 2
    %v212 = vadd.f32 %v210, %v211
    %v213 = vrot.slane %v212, 1
    %v214 = vadd.f32 %v212, %v213
    %v215 = vmul.f32 %v208, 0.00390625
    %v216 = vmul.f32 %v214, 0.00390625
    %v217 = vsub.f32 %v173, %v215
    %v218 = vsub.f32 %v194, %v216
    %v219 = vmul.f32 %v217, %v217
    %v220 = vmul.f32 %v218, %v218
    %v221 = vsel %vm59, %v219, 0.0
    %222 = vadd.xlane.f32.xlu0 %v221
    %v223 = vpop.xlane.xlu0 %222
    %v224 = vsel %vm59, %v220, 0.0
    %225 = vadd.xlane.f32.xlu0 %v224
    %v226 = vpop.xlane.xlu0 %225
    %v227 = vrot.slane %v223, 4
    %v228 = vadd.f32 %v223, %v227
    %v229 = vrot.slane %v228, 2
    %v230 = vadd.f32 %v228, %v229
    %v231 = vrot.slane %v230, 1
    %v232 = vadd.f32 %v230, %v231
    %v233 = vrot.slane %v226, 4
    %v234 = vadd.f32 %v226, %v233
    %v235 = vrot.slane %v234, 2
    %v236 = vadd.f32 %v234, %v235
    %v237 = vrot.slane %v236, 1
    %v238 = vadd.f32 %v236, %v237
    %v239 = vmul.f32 %v232, 0.00390625
    %v240 = vmul.f32 %v238, 0.00390625
    %v241 = vadd.f32 %v239, 1e-08
    %v242 = vadd.f32 %v240, 1e-08
    %v243 = vrsqrt.pop %v241
    %v244 = vmul.f32 %v243, %v241
    %v245 = vmul.f32 %v244, %v243
    %v246 = vmul.f32 0.5, %v245
    %v247 = vsub.f32 1.5, %v246
    %v248 = vmul.f32 %v243, %v247
    %vm249 = vweird.f32 %v241
    %vm250 = vweird.f32 %v243
    %vm251 = vmor %vm249, %vm250
    %v252 = vsel %vm251, %v243, %v248
    %v253 = vrsqrt.pop %v242
    %v254 = vmul.f32 %v253, %v242
    %v255 = vmul.f32 %v254, %v253
    %v256 = vmul.f32 0.5, %v255
    %v257 = vsub.f32 1.5, %v256
    %v258 = vmul.f32 %v253, %v257
    %vm259 = vweird.f32 %v242
    %vm260 = vweird.f32 %v253
    %vm261 = vmor %vm259, %vm260
    %v262 = vsel %vm261, %v253, %v258
    %v263 = vmul.f32 %v217, %v252
    %v264 = vmul.f32 %v218, %v262
    %v265 = vpack.c.bf16 %v263, %v263
    %v266 = vpack.c.bf16 %v264, %v264
    %v269 = vunpack.c.l.b16 %v265
    %v270 = vunpack.c.l.b16 %v266
    %v271 = vpack.c.b16 %v270, %v269
    %v273 = vsel %vm59, %v271, 0
    %275 = vmatpush.bf16.msra.mxu0 0
    %276 = vmatpush.bf16.msra.mxu0 0
    %277 = vmatpush.bf16.msra.mxu0 0
    %278 = vmatpush.bf16.msra.mxu0 0
    %279 = vmatpush.bf16.msra.mxu0 0
    %280 = vmatpush.bf16.msra.mxu0 0
    %281 = vmatpush.bf16.msra.mxu0 %v56
    %282 = vmatpush.bf16.msra.mxu0 %v55
    %283 = vmatmul.bf16.gmra.mxu0 %v273
    %v284 = vpop.f32.mrf.mxu0
    %v285 = vadd.f32 %v40, %v284
    %v286 = vpop.f32.mrf.mxu0
    %v287 = vadd.f32 %v40, %v286
    %288 = vdwg.mxu0
    %v289 = vpack.c.bf16 %v285, %v285
    %v290 = vpack.c.bf16 %v287, %v287
    %v292 = vunpack.c.l.b16 %v289
    %v293 = vpack.c.b16 %v292, %v292
    %294 = vrot.lane.b32.xlu0 %v293, 96
    %v295 = vpop.permute.xlu0 %294
    %297 = vxpose.xlu0.c.b16.start [1/8] %v295, 128
    %298 = vxpose.xlu0.c.b16.cont [2/8] 0, 128
    %299 = vxpose.xlu0.c.b16.cont [3/8] 0, 128
    %300 = vxpose.xlu0.c.b16.cont [4/8] 0, 128
    %301 = vxpose.xlu0.c.b16.cont [5/8] 0, 128
    %302 = vxpose.xlu0.c.b16.cont [6/8] 0, 128
    %303 = vxpose.xlu0.c.b16.cont [7/8] 0, 128
    %304 = vxpose.xlu0.c.b16.end [8/8] 0, 128
    %v305 = vpop.trf.xlu0
    %v306 = vpop.trf.xlu0
    %v307 = vpop.trf.xlu0
    %v308 = vpop.trf.xlu0
    %v309 = vpop.trf.xlu0
    %v310 = vpop.trf.xlu0
    %v311 = vpop.trf.xlu0
    %v312 = vpop.trf.xlu0
    %v314 = vsel %vm129, %v305, 0
    %v317 = vsel %vm129, %v306, 0
    %v320 = vsel %vm159, %v289, 0
    %322 = vmatpush.bf16.msra.mxu0 0
    %323 = vmatpush.bf16.msra.mxu0 0
    %324 = vmatpush.bf16.msra.mxu0 0
    %325 = vmatpush.bf16.msra.mxu0 0
    %326 = vmatpush.bf16.msra.mxu0 0
    %327 = vmatpush.bf16.msra.mxu0 0
    %328 = vmatpush.bf16.msra.mxu0 0
    %329 = vmatpush.bf16.msra.mxu0 %v320
    %330 = vmatmul.bf16.gmra.mxu0 %v314
    %v331 = vpop.f32.mrf.mxu0
    %v332 = vadd.f32 0.0, %v331
    %v333 = vpop.f32.mrf.mxu0
    %v334 = vadd.f32 0.0, %v333
    %335 = vmatmul.bf16.gmra.mxu0 %v317
    %v336 = vpop.f32.mrf.mxu0
    %v337 = vadd.f32 0.0, %v336
    %v338 = vpop.f32.mrf.mxu0
    %v339 = vadd.f32 0.0, %v338
    %340 = vdwg.mxu0
    %v342 = vunpack.c.l.b16 %v290
    %v343 = vpack.c.b16 %v342, %v342
    %344 = vrot.lane.b32.xlu0 %v343, 96
    %v345 = vpop.permute.xlu0 %344
    %347 = vxpose.xlu0.c.b16.start [1/8] %v345, 128
    %348 = vxpose.xlu0.c.b16.cont [2/8] 0, 128
    %349 = vxpose.xlu0.c.b16.cont [3/8] 0, 128
    %350 = vxpose.xlu0.c.b16.cont [4/8] 0, 128
    %351 = vxpose.xlu0.c.b16.cont [5/8] 0, 128
    %352 = vxpose.xlu0.c.b16.cont [6/8] 0, 128
    %353 = vxpose.xlu0.c.b16.cont [7/8] 0, 128
    %354 = vxpose.xlu0.c.b16.end [8/8] 0, 128
    %v355 = vpop.trf.xlu0
    %v356 = vpop.trf.xlu0
    %v357 = vpop.trf.xlu0
    %v358 = vpop.trf.xlu0
    %v359 = vpop.trf.xlu0
    %v360 = vpop.trf.xlu0
    %v361 = vpop.trf.xlu0
    %v362 = vpop.trf.xlu0
    %v364 = vsel %vm129, %v355, 0
    %v367 = vsel %vm129, %v356, 0
    %v370 = vsel %vm159, %v290, 0
    %372 = vmatpush.bf16.msra.mxu0 0
    %373 = vmatpush.bf16.msra.mxu0 0
    %374 = vmatpush.bf16.msra.mxu0 0
    %375 = vmatpush.bf16.msra.mxu0 0
    %376 = vmatpush.bf16.msra.mxu0 0
    %377 = vmatpush.bf16.msra.mxu0 0
    %378 = vmatpush.bf16.msra.mxu0 0
    %379 = vmatpush.bf16.msra.mxu0 %v370
    %380 = vmatmul.bf16.gmra.mxu0 %v364
    %v381 = vpop.f32.mrf.mxu0
    %v382 = vadd.f32 0.0, %v381
    %v383 = vpop.f32.mrf.mxu0
    %v384 = vadd.f32 0.0, %v383
    %385 = vmatmul.bf16.gmra.mxu0 %v367
    %v386 = vpop.f32.mrf.mxu0
    %v387 = vadd.f32 0.0, %v386
    %v388 = vpop.f32.mrf.mxu0
    %v389 = vadd.f32 0.0, %v388
    %390 = vdwg.mxu0
    %v391 = vmul.f32 %v332, 0.17677669
    %v392 = vmul.f32 %v334, 0.17677669
    %v393 = vmul.f32 %v337, 0.17677669
    %v394 = vmul.f32 %v339, 0.17677669
    %v395 = vmul.f32 %v382, 0.17677669
    %v396 = vmul.f32 %v384, 0.17677669
    %v397 = vmul.f32 %v387, 0.17677669
    %v398 = vmul.f32 %v389, 0.17677669
    %v399 = vsel %vm59, %v391, -inf
    %400 = vmax.xlane.f32.xlu0 %v399
    %v401 = vpop.xlane.xlu0 %400
    %v402 = vsel %vm59, %v392, -inf
    %403 = vmax.xlane.f32.xlu0 %v402
    %v404 = vpop.xlane.xlu0 %403
    %v405 = vsel %vm59, %v393, -inf
    %406 = vmax.xlane.f32.xlu0 %v405
    %v407 = vpop.xlane.xlu0 %406
    %v408 = vsel %vm59, %v394, -inf
    %409 = vmax.xlane.f32.xlu0 %v408
    %v410 = vpop.xlane.xlu0 %409
    %v411 = vsel %vm59, %v395, -inf
    %412 = vmax.xlane.f32.xlu0 %v411
    %v413 = vpop.xlane.xlu0 %412
    %v414 = vsel %vm59, %v396, -inf
    %415 = vmax.xlane.f32.xlu0 %v414
    %v416 = vpop.xlane.xlu0 %415
    %v417 = vsel %vm59, %v397, -inf
    %418 = vmax.xlane.f32.xlu0 %v417
    %v419 = vpop.xlane.xlu0 %418
    %v420 = vsel %vm59, %v398, -inf
    %421 = vmax.xlane.f32.xlu0 %v420
    %v422 = vpop.xlane.xlu0 %421
    %v423 = vsub.f32 %v391, %v401
    %v424 = vsub.f32 %v392, %v404
    %v425 = vsub.f32 %v393, %v407
    %v426 = vsub.f32 %v394, %v410
    %v427 = vsub.f32 %v395, %v413
    %v428 = vsub.f32 %v396, %v416
    %v429 = vsub.f32 %v397, %v419
    %v430 = vsub.f32 %v398, %v422
    %v431 = vmul.f32 %v423, 1.442695
    %v432 = vpow.pop %v431
    %v433 = vmul.f32 %v424, 1.442695
    %v434 = vpow.pop %v433
    %v435 = vmul.f32 %v425, 1.442695
    %v436 = vpow.pop %v435
    %v437 = vmul.f32 %v426, 1.442695
    %v438 = vpow.pop %v437
    %v439 = vmul.f32 %v427, 1.442695
    %v440 = vpow.pop %v439
    %v441 = vmul.f32 %v428, 1.442695
    %v442 = vpow.pop %v441
    %v443 = vmul.f32 %v429, 1.442695
    %v444 = vpow.pop %v443
    %v445 = vmul.f32 %v430, 1.442695
    %v446 = vpow.pop %v445
    %v447 = vsel %vm59, %v432, 0.0
    %448 = vadd.xlane.f32.xlu0 %v447
    %v449 = vpop.xlane.xlu0 %448
    %v450 = vsel %vm59, %v434, 0.0
    %451 = vadd.xlane.f32.xlu0 %v450
    %v452 = vpop.xlane.xlu0 %451
    %v453 = vsel %vm59, %v436, 0.0
    %454 = vadd.xlane.f32.xlu0 %v453
    %v455 = vpop.xlane.xlu0 %454
    %v456 = vsel %vm59, %v438, 0.0
    %457 = vadd.xlane.f32.xlu0 %v456
    %v458 = vpop.xlane.xlu0 %457
    %v459 = vsel %vm59, %v440, 0.0
    %460 = vadd.xlane.f32.xlu0 %v459
    %v461 = vpop.xlane.xlu0 %460
    %v462 = vsel %vm59, %v442, 0.0
    %463 = vadd.xlane.f32.xlu0 %v462
    %v464 = vpop.xlane.xlu0 %463
    %v465 = vsel %vm59, %v444, 0.0
    %466 = vadd.xlane.f32.xlu0 %v465
    %v467 = vpop.xlane.xlu0 %466
    %v468 = vsel %vm59, %v446, 0.0
    %469 = vadd.xlane.f32.xlu0 %v468
    %v470 = vpop.xlane.xlu0 %469
    %v471 = vrcp.pop %v449
    %v472 = vrcp.pop %v452
    %v473 = vrcp.pop %v455
    %v474 = vrcp.pop %v458
    %v475 = vrcp.pop %v461
    %v476 = vrcp.pop %v464
    %v477 = vrcp.pop %v467
    %v478 = vrcp.pop %v470
    %v479 = vmul.f32 %v432, %v471
    %v480 = vmul.f32 %v434, %v472
    %v481 = vmul.f32 %v436, %v473
    %v482 = vmul.f32 %v438, %v474
    %v483 = vmul.f32 %v440, %v475
    %v484 = vmul.f32 %v442, %v476
    %v485 = vmul.f32 %v444, %v477
    %v486 = vmul.f32 %v446, %v478
    %v487 = vpack.c.bf16 %v479, %v479
    %v488 = vpack.c.bf16 %v480, %v480
    %v489 = vpack.c.bf16 %v481, %v481
    %v490 = vpack.c.bf16 %v482, %v482
    %v491 = vpack.c.bf16 %v483, %v483
    %v492 = vpack.c.bf16 %v484, %v484
    %v493 = vpack.c.bf16 %v485, %v485
    %v494 = vpack.c.bf16 %v486, %v486
    %495 = vrot.lane.b32.xlu0 %v293, 64
    %v496 = vpop.permute.xlu0 %495
    %v501 = vunpack.c.l.b16 %v487
    %v502 = vunpack.c.l.b16 %v488
    %v503 = vunpack.c.l.b16 %v489
    %v504 = vunpack.c.l.b16 %v490
    %v505 = vpack.c.b16 %v502, %v501
    %v506 = vpack.c.b16 %v504, %v503
    %v510 = vsel %vm59, %v496, 0
    %512 = vmatpush.bf16.msra.mxu0 0
    %513 = vmatpush.bf16.msra.mxu0 0
    %514 = vmatpush.bf16.msra.mxu0 0
    %515 = vmatpush.bf16.msra.mxu0 0
    %516 = vmatpush.bf16.msra.mxu0 0
    %517 = vmatpush.bf16.msra.mxu0 0
    %518 = vmatpush.bf16.msra.mxu0 %v506
    %519 = vmatpush.bf16.msra.mxu0 %v505
    %520 = vmatmul.bf16.gmra.mxu0 %v510
    %v521 = vpop.f32.mrf.mxu0
    %v522 = vadd.f32 0.0, %v521
    %v523 = vpop.f32.mrf.mxu0
    %524 = vdwg.mxu0
    %525 = vrot.lane.b32.xlu0 %v343, 64
    %v526 = vpop.permute.xlu0 %525
    %v531 = vunpack.c.l.b16 %v491
    %v532 = vunpack.c.l.b16 %v492
    %v533 = vunpack.c.l.b16 %v493
    %v534 = vunpack.c.l.b16 %v494
    %v535 = vpack.c.b16 %v532, %v531
    %v536 = vpack.c.b16 %v534, %v533
    %v540 = vsel %vm59, %v526, 0
    %542 = vmatpush.bf16.msra.mxu0 0
    %543 = vmatpush.bf16.msra.mxu0 0
    %544 = vmatpush.bf16.msra.mxu0 0
    %545 = vmatpush.bf16.msra.mxu0 0
    %546 = vmatpush.bf16.msra.mxu0 0
    %547 = vmatpush.bf16.msra.mxu0 0
    %548 = vmatpush.bf16.msra.mxu0 %v536
    %549 = vmatpush.bf16.msra.mxu0 %v535
    %550 = vmatmul.bf16.gmra.mxu0 %v540
    %v551 = vpop.f32.mrf.mxu0
    %v552 = vadd.f32 0.0, %v551
    %v553 = vpop.f32.mrf.mxu0
    %554 = vdwg.mxu0
    %v555 = vld [vmem:[%s3] sm:$0x1]
    %v557 = vperm.slane %v555, 0
    %v559 = vmul.f32 %v522, %v557
    %v560 = vmul.f32 %v552, %v557
    %v561 = vsel %vm59, %v559, 0.0
    %562 = vadd.xlane.f32.xlu0 %v561
    %v563 = vpop.xlane.xlu0 %562
    %v564 = vsel %vm59, %v560, 0.0
    %565 = vadd.xlane.f32.xlu0 %v564
    %v566 = vpop.xlane.xlu0 %565
    %v567 = vld [vmem:[#allocation2] sm:$0x1]
    %v569 = vperm.slane %v567, 0
    %v571 = vadd.f32 %v563, %v569
    %v572 = vadd.f32 %v566, %v569
    %574 = vset.pattern.permute.xlu0 0
    %575 = vperm.xlu0 %574, %v571
    %v576 = vpop.permute.xlu0 %575
    %579 = vset.pattern.permute.xlu0 0
    %580 = vperm.xlu0 %579, %v572
    %v581 = vpop.permute.xlu0 %580
    %v583 = vmul.f32 %v576, %v522
    %v584 = vmul.f32 %v581, %v552
    %v585 = vsel %vm59, %v32, 0.0
    %v586 = vrot.slane %v585, 4
    %v587 = vadd.f32 %v585, %v586
    %v588 = vrot.slane %v587, 2
    %v589 = vadd.f32 %v587, %v588
    %v590 = vrot.slane %v589, 1
    %v591 = vadd.f32 %v589, %v590
    %v592 = vsel %vm59, %v33, 0.0
    %v593 = vrot.slane %v592, 4
    %v594 = vadd.f32 %v592, %v593
    %v595 = vrot.slane %v594, 2
    %v596 = vadd.f32 %v594, %v595
    %v597 = vrot.slane %v596, 1
    %v598 = vadd.f32 %v596, %v597
    %v599 = vmul.f32 %v591, 0.125
    %v600 = vmul.f32 %v598, 0.125
    %v601 = vsel %vm59, %v583, 0.0
    %v602 = vrot.slane %v601, 4
    %v603 = vadd.f32 %v601, %v602
    %v604 = vrot.slane %v603, 2
    %v605 = vadd.f32 %v603, %v604
    %v606 = vrot.slane %v605, 1
    %v607 = vadd.f32 %v605, %v606
    %v608 = vsel %vm59, %v584, 0.0
    %v609 = vrot.slane %v608, 4
    %v610 = vadd.f32 %v608, %v609
    %v611 = vrot.slane %v610, 2
    %v612 = vadd.f32 %v610, %v611
    %v613 = vrot.slane %v612, 1
    %v614 = vadd.f32 %v612, %v613
    %v615 = vmul.f32 %v607, 0.125
    %v616 = vmul.f32 %v614, 0.125
    %v617 = vsel %vm59, %v32, -inf
    %v618 = vrot.slane %v617, 4
    %v619 = vmax.f32 %v617, %v618
    %v620 = vrot.slane %v619, 2
    %v621 = vmax.f32 %v619, %v620
    %v622 = vrot.slane %v621, 1
    %v623 = vmax.f32 %v621, %v622
    %v624 = vsel %vm59, %v33, -inf
    %v625 = vrot.slane %v624, 4
    %v626 = vmax.f32 %v624, %v625
    %v627 = vrot.slane %v626, 2
    %v628 = vmax.f32 %v626, %v627
    %v629 = vrot.slane %v628, 1
    %v630 = vmax.f32 %v628, %v629
    %v631 = vsel %vm59, %v583, -inf
    %v632 = vrot.slane %v631, 4
    %v633 = vmax.f32 %v631, %v632
    %v634 = vrot.slane %v633, 2
    %v635 = vmax.f32 %v633, %v634
    %v636 = vrot.slane %v635, 1
    %v637 = vmax.f32 %v635, %v636
    %v638 = vsel %vm59, %v584, -inf
    %v639 = vrot.slane %v638, 4
    %v640 = vmax.f32 %v638, %v639
    %v641 = vrot.slane %v640, 2
    %v642 = vmax.f32 %v640, %v641
    %v643 = vrot.slane %v642, 1
    %v644 = vmax.f32 %v642, %v643
    %v645 = vld [vmem:[%s5] sm:$0xf]
    %v646 = vld [vmem:[%s5 + $0x4] sm:$0xf]
    %v647 = vld [vmem:[%s5 + $0x8] sm:$0xf]
    %v648 = vld [vmem:[%s5 + $0xc] sm:$0xf]
    %v649 = vld [vmem:[%s5 + $0x10] sm:$0xf]
    %v650 = vld [vmem:[%s5 + $0x14] sm:$0xf]
    %v651 = vld [vmem:[%s5 + $0x18] sm:$0xf]
    %v652 = vld [vmem:[%s5 + $0x1c] sm:$0xf]
    %v653 = vld [vmem:[%s5 + $0x20] sm:$0xf]
    %v654 = vld [vmem:[%s5 + $0x24] sm:$0xf]
    %v655 = vld [vmem:[%s5 + $0x28] sm:$0xf]
    %v656 = vld [vmem:[%s5 + $0x2c] sm:$0xf]
    %v657 = vld [vmem:[%s5 + $0x30] sm:$0xf]
    %v658 = vld [vmem:[%s5 + $0x34] sm:$0xf]
    %v659 = vld [vmem:[%s5 + $0x38] sm:$0xf]
    %v660 = vld [vmem:[%s5 + $0x3c] sm:$0xf]
    %v661 = vpack.c.bf16 %v599, %v599
    %v662 = vpack.c.bf16 %v600, %v600
    %v663 = vpack.c.bf16 %v615, %v615
    %v664 = vpack.c.bf16 %v616, %v616
    %v667 = vunpack.c.l.b16 %v663
    %v668 = vunpack.c.l.b16 %v664
    %vm669 = vcmask 1041409
    %v670 = vsel %vm669, %v668, %v667
    %v671 = vpack.c.b16 %v670, %v670
    %v676 = vunpack.c.l.b16 %v649
    %v677 = vunpack.c.l.b16 %v650
    %v678 = vunpack.c.l.b16 %v651
    %v679 = vunpack.c.l.b16 %v652
    %v680 = vpack.c.b16 %v677, %v676
    %v681 = vpack.c.b16 %v679, %v678
    %v685 = vsel %vm59, %v671, 0
    %687 = vmatpush.bf16.msra.mxu0 0
    %688 = vmatpush.bf16.msra.mxu0 0
    %689 = vmatpush.bf16.msra.mxu0 0
    %690 = vmatpush.bf16.msra.mxu0 0
    %691 = vmatpush.bf16.msra.mxu0 0
    %692 = vmatpush.bf16.msra.mxu0 0
    %693 = vmatpush.bf16.msra.mxu0 %v681
    %694 = vmatpush.bf16.msra.mxu0 %v680
    %695 = vmatmul.bf16.gmra.mxu0 %v685
    %v696 = vpop.f32.mrf.mxu0
    %v697 = vadd.f32 0.0, %v696
    %v698 = vpop.f32.mrf.mxu0
    %699 = vdwg.mxu0
    %v702 = vunpack.c.l.b16 %v661
    %v703 = vunpack.c.l.b16 %v662
    %v704 = vsel %vm669, %v703, %v702
    %v705 = vpack.c.b16 %v704, %v704
    %v710 = vunpack.c.l.b16 %v645
    %v711 = vunpack.c.l.b16 %v646
    %v712 = vunpack.c.l.b16 %v647
    %v713 = vunpack.c.l.b16 %v648
    %v714 = vpack.c.b16 %v711, %v710
    %v715 = vpack.c.b16 %v713, %v712
    %v719 = vsel %vm59, %v705, 0
    %721 = vmatpush.bf16.msra.mxu0 0
    %722 = vmatpush.bf16.msra.mxu0 0
    %723 = vmatpush.bf16.msra.mxu0 0
    %724 = vmatpush.bf16.msra.mxu0 0
    %725 = vmatpush.bf16.msra.mxu0 0
    %726 = vmatpush.bf16.msra.mxu0 0
    %727 = vmatpush.bf16.msra.mxu0 %v715
    %728 = vmatpush.bf16.msra.mxu0 %v714
    %729 = vmatmul.bf16.gmra.mxu0 %v719
    %v730 = vpop.f32.mrf.mxu0
    %v731 = vadd.f32 %v697, %v730
    %v732 = vpop.f32.mrf.mxu0
    %733 = vdwg.mxu0
    %v734 = vpack.c.bf16 %v623, %v623
    %v735 = vpack.c.bf16 %v630, %v630
    %v738 = vunpack.c.l.b16 %v734
    %v739 = vunpack.c.l.b16 %v735
    %v740 = vsel %vm669, %v739, %v738
    %v741 = vpack.c.b16 %v740, %v740
    %v746 = vunpack.c.l.b16 %v653
    %v747 = vunpack.c.l.b16 %v654
    %v748 = vunpack.c.l.b16 %v655
    %v749 = vunpack.c.l.b16 %v656
    %v750 = vpack.c.b16 %v747, %v746
    %v751 = vpack.c.b16 %v749, %v748
    %v755 = vsel %vm59, %v741, 0
    %757 = vmatpush.bf16.msra.mxu0 0
    %758 = vmatpush.bf16.msra.mxu0 0
    %759 = vmatpush.bf16.msra.mxu0 0
    %760 = vmatpush.bf16.msra.mxu0 0
    %761 = vmatpush.bf16.msra.mxu0 0
    %762 = vmatpush.bf16.msra.mxu0 0
    %763 = vmatpush.bf16.msra.mxu0 %v751
    %764 = vmatpush.bf16.msra.mxu0 %v750
    %765 = vmatmul.bf16.gmra.mxu0 %v755
    %v766 = vpop.f32.mrf.mxu0
    %v767 = vadd.f32 0.0, %v766
    %v768 = vpop.f32.mrf.mxu0
    %769 = vdwg.mxu0
    %v770 = vadd.f32 %v731, %v767
    %v771 = vpack.c.bf16 %v637, %v637
    %v772 = vpack.c.bf16 %v644, %v644
    %v775 = vunpack.c.l.b16 %v771
    %v776 = vunpack.c.l.b16 %v772
    %v777 = vsel %vm669, %v776, %v775
    %v778 = vpack.c.b16 %v777, %v777
    %v783 = vunpack.c.l.b16 %v657
    %v784 = vunpack.c.l.b16 %v658
    %v785 = vunpack.c.l.b16 %v659
    %v786 = vunpack.c.l.b16 %v660
    %v787 = vpack.c.b16 %v784, %v783
    %v788 = vpack.c.b16 %v786, %v785
    %v792 = vsel %vm59, %v778, 0
    %794 = vmatpush.bf16.msra.mxu0 0
    %795 = vmatpush.bf16.msra.mxu0 0
    %796 = vmatpush.bf16.msra.mxu0 0
    %797 = vmatpush.bf16.msra.mxu0 0
    %798 = vmatpush.bf16.msra.mxu0 0
    %799 = vmatpush.bf16.msra.mxu0 0
    %800 = vmatpush.bf16.msra.mxu0 %v788
    %801 = vmatpush.bf16.msra.mxu0 %v787
    %802 = vmatmul.bf16.gmra.mxu0 %v792
    %v803 = vpop.f32.mrf.mxu0
    %v804 = vadd.f32 0.0, %v803
    %v805 = vpop.f32.mrf.mxu0
    %806 = vdwg.mxu0
    %v807 = vadd.f32 %v770, %v804
    %v808 = vld [vmem:[%s6] sm:$0x1]
    %v810 = vperm.slane %v808, 0
    %v812 = vadd.f32 %v807, %v810
    %vm813 = vcmask 25600
    %814 = vst.msk [vmem:[#allocation3] sm:$0x3] %vm813, %v812
    // Predicated region
    $region30: #{tpu_custom_call.1} parent=1 // pred_check
      _
    $region31: #{tpu_custom_call.1} parent=1 // pred_check_branch
      %816 = sbr.rel (0) target = $region33
    $region32: #{tpu_custom_call.1} parent=1 // pred_region
      %818 = vsyncadd [#allocation4], 0
      %s820 = sshll.u32 [#allocation3], 4
      %s821 = int_to_ptr.vmem [resolvable:$true] %s820
      %s822 = sshll.u32 %s7, 4
      %s823 = int_to_ptr.hbm [resolvable:$true] %s822
      %825 = dma.vmem_to_hbm [thread:$0]  %s821, 32, %s823, [#allocation4]
    $region33: #{tpu_custom_call.1} parent=1 // pred_fallthru
      _
    // Predicated region
    $region34: #{tpu_custom_call.1} parent=1 // pred_check
      _
    $region35: #{tpu_custom_call.1} parent=1 // pred_check_branch
      %827 = sbr.rel (0) target = $region37
    $region36: #{tpu_custom_call.1} parent=1 // pred_region
      %829 = dma.done [#allocation4], 32
    $region37: #{tpu_custom_call.1} parent=1 // pred_fallthru
      _
    %830 = vsyncpa [#allocation4], 1

// kernel: tpu_custom_call.1
$region0: #{tpu_custom_call.1}
  #allocation0 [shape = 'u32[]', space=smem, size = 0x4, offset = 0x4, fixed_abs, tag = 'smem constant byte address 0x4 - core index']
  #allocation1 [shape = 'u32[72,128]{1,0:T(1,128)}', space=vmem, size = 0x9000, scoped, tag = 'internal scratch']
  #allocation2 [shape = 'f32[1,1]{1,0:T(1,128)S(1)}', space=vmem, size = 0x200, scoped, tag = 'scoped memory for tpu_custom_call.1']
  %s0 = inlined_call_operand.vmem [shape: bf16[2,8,32], index: 0, kind: input, shape index: {}]
  %s1 = inlined_call_operand.vmem [shape: bf16[32,96], index: 1, kind: input, shape index: {}]
  %s2 = inlined_call_operand.vmem [shape: f32[1,96], index: 2, kind: input, shape index: {}]
  %s3 = inlined_call_operand.vmem [shape: f32[1,32], index: 3, kind: input, shape index: {}]
  %s4 = inlined_call_operand.<no memory space> [shape: f32[1,1], index: 4, kind: input, shape index: {}]
  %s5 = inlined_call_operand.vmem [shape: bf16[4,32,4], index: 5, kind: input, shape index: {}]
  %s6 = inlined_call_operand.vmem [shape: f32[1,4], index: 6, kind: input, shape index: {}]
  %s7 = inlined_call_operand.hbm [shape: f32[2,4], index: 7, kind: output, shape index: {}]
  %s8 = sld [smem:[#allocation0]]
  $region38: #{tpu_custom_call.1} parent=0
    _
  %s10 = ssub.s32 1, %s8
  %s11 = scalar_select 0, %s10, %s8
  %v12 = vstv %s4
  %13 = vst [vmem:[#allocation2] sm:$0x1] %v12
  $region1: #{tpu_custom_call.1} parent=0
    #allocation3 [shape = 'u8[1024]{0}', space=vmem, size = 0x400, scoped, tag = 'output window, operand 0, single buffered']
    #allocation4 [shape = 's32[1]{0}', space=sflag, size = 0x4, scoped, tag = 'scoped memory for tpu_custom_call.1']
    %14 = vsyncpa [#allocation4], 0
    // Predicated region
    $region2: #{tpu_custom_call.1} parent=1 // pred_check
      _
    $region3: #{tpu_custom_call.1} parent=1 // pred_check_branch
      %16 = sbr.rel (0) target = $region5
    $region4: #{tpu_custom_call.1} parent=1 // pred_region
      _
    $region5: #{tpu_custom_call.1} parent=1 // pred_fallthru
      _
    // Predicated region
    $region6: #{tpu_custom_call.1} parent=1 // pred_check
      _
    $region7: #{tpu_custom_call.1} parent=1 // pred_check_branch
      %18 = sbr.rel (0) target = $region9
    $region8: #{tpu_custom_call.1} parent=1 // pred_region
      _
    $region9: #{tpu_custom_call.1} parent=1 // pred_fallthru
      _
    // Predicated region
    $region10: #{tpu_custom_call.1} parent=1 // pred_check
      _
    $region11: #{tpu_custom_call.1} parent=1 // pred_check_branch
      %20 = sbr.rel (0) target = $region13
    $region12: #{tpu_custom_call.1} parent=1 // pred_region
      _
    $region13: #{tpu_custom_call.1} parent=1 // pred_fallthru
      _
    // Predicated region
    $region14: #{tpu_custom_call.1} parent=1 // pred_check
      _
    $region15: #{tpu_custom_call.1} parent=1 // pred_check_branch
      %22 = sbr.rel (0) target = $region17
    $region16: #{tpu_custom_call.1} parent=1 // pred_region
      _
    $region17: #{tpu_custom_call.1} parent=1 // pred_fallthru
      _
    // Predicated region
    $region18: #{tpu_custom_call.1} parent=1 // pred_check
      _
    $region19: #{tpu_custom_call.1} parent=1 // pred_check_branch
      %24 = sbr.rel (0) target = $region21
    $region20: #{tpu_custom_call.1} parent=1 // pred_region
      _
    $region21: #{tpu_custom_call.1} parent=1 // pred_fallthru
      _
    // Predicated region
    $region22: #{tpu_custom_call.1} parent=1 // pred_check
      _
    $region23: #{tpu_custom_call.1} parent=1 // pred_check_branch
      %26 = sbr.rel (0) target = $region25
    $region24: #{tpu_custom_call.1} parent=1 // pred_region
      _
    $region25: #{tpu_custom_call.1} parent=1 // pred_fallthru
      _
    // Predicated region
    $region26: #{tpu_custom_call.1} parent=1 // pred_check
      _
    $region27: #{tpu_custom_call.1} parent=1 // pred_check_branch
      %28 = sbr.rel (0) target = $region29
    $region28: #{tpu_custom_call.1} parent=1 // pred_region
      _
    $region29: #{tpu_custom_call.1} parent=1 // pred_fallthru
      _
    %v30 = vld [vmem:[%s0] sm:$0xf]
    %v31 = vld [vmem:[%s0 + $0x4] sm:$0xf]
    %v32 = vunpack.c.l.bf16 %v30
    %v33 = vunpack.c.l.bf16 %v31
    %v34 = vld [vmem:[%s1] sm:$0xf]
    %v35 = vld [vmem:[%s1 + $0x4] sm:$0xf]
    %v36 = vld [vmem:[%s1 + $0x8] sm:$0xf]
    %v37 = vld [vmem:[%s1 + $0xc] sm:$0xf]
    %v38 = vld [vmem:[%s2] sm:$0x1]
    %v40 = vperm.slane %v38, 0
    %v44 = vunpack.c.l.b16 %v30
    %v45 = vunpack.c.l.b16 %v31
    %v46 = vpack.c.b16 %v45, %v44
    %v51 = vunpack.c.l.b16 %v34
    %v52 = vunpack.c.l.b16 %v35
    %v53 = vunpack.c.l.b16 %v36
    %v54 = vunpack.c.l.b16 %v37
    %v55 = vpack.c.b16 %v52, %v51
    %v56 = vpack.c.b16 %v54, %v53
    %vm59 = vcmask 261120
    %v61 = vsel %vm59, %v46, 0
    %63 = vmatpush.bf16.msra.mxu0 0
    %64 = vmatpush.bf16.msra.mxu0 0
    %65 = vmatpush.bf16.msra.mxu0 0
    %66 = vmatpush.bf16.msra.mxu0 0
    %67 = vmatpush.bf16.msra.mxu0 0
    %68 = vmatpush.bf16.msra.mxu0 0
    %69 = vmatpush.bf16.msra.mxu0 %v56
    %70 = vmatpush.bf16.msra.mxu0 %v55
    %71 = vmatmul.bf16.gmra.mxu0 %v61
    %v72 = vpop.f32.mrf.mxu0
    %v73 = vadd.f32 %v40, %v72
    %v74 = vpop.f32.mrf.mxu0
    %v75 = vadd.f32 %v40, %v74
    %76 = vdwg.mxu0
    %v77 = vpack.c.bf16 %v73, %v73
    %v78 = vpack.c.bf16 %v75, %v75
    %v80 = vunpack.c.l.b16 %v77
    %v81 = vpack.c.b16 %v80, %v80
    %82 = vrot.lane.b32.xlu0 %v81, 96
    %v83 = vpop.permute.xlu0 %82
    %v85 = vsel %vm59, %v83, 0
    %v88 = vsel %vm59, %v77, 0
    %90 = vmatpush.bf16.xpose.msra.mxu0 0
    %91 = vmatpush.bf16.xpose.msra.mxu0 0
    %92 = vmatpush.bf16.xpose.msra.mxu0 0
    %93 = vmatpush.bf16.xpose.msra.mxu0 0
    %94 = vmatpush.bf16.xpose.msra.mxu0 0
    %95 = vmatpush.bf16.xpose.msra.mxu0 0
    %96 = vmatpush.bf16.xpose.msra.mxu0 0
    %97 = vmatpush.bf16.xpose.msra.mxu0 %v88
    %98 = vmatmul.bf16.gmra.mxu0 %v85
    %v99 = vpop.f32.mrf.mxu0
    %v100 = vadd.f32 0.0, %v99
    %v101 = vpop.f32.mrf.mxu0
    %102 = vdwg.mxu0
    %v104 = vunpack.c.l.b16 %v78
    %v105 = vpack.c.b16 %v104, %v104
    %106 = vrot.lane.b32.xlu0 %v105, 96
    %v107 = vpop.permute.xlu0 %106
    %v109 = vsel %vm59, %v107, 0
    %v112 = vsel %vm59, %v78, 0
    %114 = vmatpush.bf16.xpose.msra.mxu0 0
    %115 = vmatpush.bf16.xpose.msra.mxu0 0
    %116 = vmatpush.bf16.xpose.msra.mxu0 0
    %117 = vmatpush.bf16.xpose.msra.mxu0 0
    %118 = vmatpush.bf16.xpose.msra.mxu0 0
    %119 = vmatpush.bf16.xpose.msra.mxu0 0
    %120 = vmatpush.bf16.xpose.msra.mxu0 0
    %121 = vmatpush.bf16.xpose.msra.mxu0 %v112
    %122 = vmatmul.bf16.gmra.mxu0 %v109
    %v123 = vpop.f32.mrf.mxu0
    %v124 = vadd.f32 0.0, %v123
    %v125 = vpop.f32.mrf.mxu0
    %126 = vdwg.mxu0
    %v127 = vmul.f32 %v100, 0.17677669
    %v128 = vmul.f32 %v124, 0.17677669
    %vm129 = vcmask 64512
    %v130 = vsel %vm129, %v127, -inf
    %131 = vmax.xlane.f32.xlu0 %v130
    %v132 = vpop.xlane.xlu0 %131
    %v133 = vsel %vm129, %v128, -inf
    %134 = vmax.xlane.f32.xlu0 %v133
    %v135 = vpop.xlane.xlu0 %134
    %v136 = vsub.f32 %v127, %v132
    %v137 = vsub.f32 %v128, %v135
    %v138 = vmul.f32 %v136, 1.442695
    %v139 = vpow.pop %v138
    %v140 = vmul.f32 %v137, 1.442695
    %v141 = vpow.pop %v140
    %v142 = vsel %vm129, %v139, 0.0
    %143 = vadd.xlane.f32.xlu0 %v142
    %v144 = vpop.xlane.xlu0 %143
    %v145 = vsel %vm129, %v141, 0.0
    %146 = vadd.xlane.f32.xlu0 %v145
    %v147 = vpop.xlane.xlu0 %146
    %v148 = vrcp.pop %v144
    %v149 = vrcp.pop %v147
    %v150 = vmul.f32 %v139, %v148
    %v151 = vmul.f32 %v141, %v149
    %v152 = vpack.c.bf16 %v150, %v150
    %v153 = vpack.c.bf16 %v151, %v151
    %154 = vrot.lane.b32.xlu0 %v81, 64
    %v155 = vpop.permute.xlu0 %154
    %v157 = vsel %vm129, %v152, 0
    %vm159 = vcmask 1043456
    %v161 = vsel %vm159, %v155, 0
    %163 = vmatpush.bf16.msra.mxu0 0
    %164 = vmatpush.bf16.msra.mxu0 0
    %165 = vmatpush.bf16.msra.mxu0 0
    %166 = vmatpush.bf16.msra.mxu0 0
    %167 = vmatpush.bf16.msra.mxu0 0
    %168 = vmatpush.bf16.msra.mxu0 0
    %169 = vmatpush.bf16.msra.mxu0 0
    %170 = vmatpush.bf16.msra.mxu0 %v161
    %171 = vmatmul.bf16.gmra.mxu0 %v157
    %v172 = vpop.f32.mrf.mxu0
    %v173 = vadd.f32 0.0, %v172
    %v174 = vpop.f32.mrf.mxu0
    %175 = vdwg.mxu0
    %176 = vrot.lane.b32.xlu0 %v105, 64
    %v177 = vpop.permute.xlu0 %176
    %v179 = vsel %vm129, %v153, 0
    %v182 = vsel %vm159, %v177, 0
    %184 = vmatpush.bf16.msra.mxu0 0
    %185 = vmatpush.bf16.msra.mxu0 0
    %186 = vmatpush.bf16.msra.mxu0 0
    %187 = vmatpush.bf16.msra.mxu0 0
    %188 = vmatpush.bf16.msra.mxu0 0
    %189 = vmatpush.bf16.msra.mxu0 0
    %190 = vmatpush.bf16.msra.mxu0 0
    %191 = vmatpush.bf16.msra.mxu0 %v182
    %192 = vmatmul.bf16.gmra.mxu0 %v179
    %v193 = vpop.f32.mrf.mxu0
    %v194 = vadd.f32 0.0, %v193
    %v195 = vpop.f32.mrf.mxu0
    %196 = vdwg.mxu0
    %v197 = vsel %vm59, %v173, 0.0
    %198 = vadd.xlane.f32.xlu0 %v197
    %v199 = vpop.xlane.xlu0 %198
    %v200 = vsel %vm59, %v194, 0.0
    %201 = vadd.xlane.f32.xlu0 %v200
    %v202 = vpop.xlane.xlu0 %201
    %v203 = vrot.slane %v199, 4
    %v204 = vadd.f32 %v199, %v203
    %v205 = vrot.slane %v204, 2
    %v206 = vadd.f32 %v204, %v205
    %v207 = vrot.slane %v206, 1
    %v208 = vadd.f32 %v206, %v207
    %v209 = vrot.slane %v202, 4
    %v210 = vadd.f32 %v202, %v209
    %v211 = vrot.slane %v210, 2
    %v212 = vadd.f32 %v210, %v211
    %v213 = vrot.slane %v212, 1
    %v214 = vadd.f32 %v212, %v213
    %v215 = vmul.f32 %v208, 0.00390625
    %v216 = vmul.f32 %v214, 0.00390625
    %v217 = vsub.f32 %v173, %v215
    %v218 = vsub.f32 %v194, %v216
    %v219 = vmul.f32 %v217, %v217
    %v220 = vmul.f32 %v218, %v218
    %v221 = vsel %vm59, %v219, 0.0
    %222 = vadd.xlane.f32.xlu0 %v221
    %v223 = vpop.xlane.xlu0 %222
    %v224 = vsel %vm59, %v220, 0.0
    %225 = vadd.xlane.f32.xlu0 %v224
    %v226 = vpop.xlane.xlu0 %225
    %v227 = vrot.slane %v223, 4
    %v228 = vadd.f32 %v223, %v227
    %v229 = vrot.slane %v228, 2
    %v230 = vadd.f32 %v228, %v229
    %v231 = vrot.slane %v230, 1
    %v232 = vadd.f32 %v230, %v231
    %v233 = vrot.slane %v226, 4
    %v234 = vadd.f32 %v226, %v233
    %v235 = vrot.slane %v234, 2
    %v236 = vadd.f32 %v234, %v235
    %v237 = vrot.slane %v236, 1
    %v238 = vadd.f32 %v236, %v237
    %v239 = vmul.f32 %v232, 0.00390625
    %v240 = vmul.f32 %v238, 0.00390625
    %v241 = vadd.f32 %v239, 1e-08
    %v242 = vadd.f32 %v240, 1e-08
    %v243 = vrsqrt.pop %v241
    %v244 = vmul.f32 %v243, %v241
    %v245 = vmul.f32 %v244, %v243
    %v246 = vmul.f32 0.5, %v245
    %v247 = vsub.f32 1.5, %v246
    %v248 = vmul.f32 %v243, %v247
    %vm249 = vweird.f32 %v241
    %vm250 = vweird.f32 %v243
    %vm251 = vmor %vm249, %vm250
    %v252 = vsel %vm251, %v243, %v248
    %v253 = vrsqrt.pop %v242
    %v254 = vmul.f32 %v253, %v242
    %v255 = vmul.f32 %v254, %v253
    %v256 = vmul.f32 0.5, %v255
    %v257 = vsub.f32 1.5, %v256
    %v258 = vmul.f32 %v253, %v257
    %vm259 = vweird.f32 %v242
    %vm260 = vweird.f32 %v253
    %vm261 = vmor %vm259, %vm260
    %v262 = vsel %vm261, %v253, %v258
    %v263 = vmul.f32 %v217, %v252
    %v264 = vmul.f32 %v218, %v262
    %v265 = vpack.c.bf16 %v263, %v263
    %v266 = vpack.c.bf16 %v264, %v264
    %v269 = vunpack.c.l.b16 %v265
    %v270 = vunpack.c.l.b16 %v266
    %v271 = vpack.c.b16 %v270, %v269
    %v273 = vsel %vm59, %v271, 0
    %275 = vmatpush.bf16.msra.mxu0 0
    %276 = vmatpush.bf16.msra.mxu0 0
    %277 = vmatpush.bf16.msra.mxu0 0
    %278 = vmatpush.bf16.msra.mxu0 0
    %279 = vmatpush.bf16.msra.mxu0 0
    %280 = vmatpush.bf16.msra.mxu0 0
    %281 = vmatpush.bf16.msra.mxu0 %v56
    %282 = vmatpush.bf16.msra.mxu0 %v55
    %283 = vmatmul.bf16.gmra.mxu0 %v273
    %v284 = vpop.f32.mrf.mxu0
    %v285 = vadd.f32 %v40, %v284
    %v286 = vpop.f32.mrf.mxu0
    %v287 = vadd.f32 %v40, %v286
    %288 = vdwg.mxu0
    %v289 = vpack.c.bf16 %v285, %v285
    %v290 = vpack.c.bf16 %v287, %v287
    %v292 = vunpack.c.l.b16 %v289
    %v293 = vpack.c.b16 %v292, %v292
    %294 = vrot.lane.b32.xlu0 %v293, 96
    %v295 = vpop.permute.xlu0 %294
    %297 = vxpose.xlu0.c.b16.start [1/8] %v295, 128
    %298 = vxpose.xlu0.c.b16.cont [2/8] 0, 128
    %299 = vxpose.xlu0.c.b16.cont [3/8] 0, 128
    %300 = vxpose.xlu0.c.b16.cont [4/8] 0, 128
    %301 = vxpose.xlu0.c.b16.cont [5/8] 0, 128
    %302 = vxpose.xlu0.c.b16.cont [6/8] 0, 128
    %303 = vxpose.xlu0.c.b16.cont [7/8] 0, 128
    %304 = vxpose.xlu0.c.b16.end [8/8] 0, 128
    %v305 = vpop.trf.xlu0
    %v306 = vpop.trf.xlu0
    %v307 = vpop.trf.xlu0
    %v308 = vpop.trf.xlu0
    %v309 = vpop.trf.xlu0
    %v310 = vpop.trf.xlu0
    %v311 = vpop.trf.xlu0
    %v312 = vpop.trf.xlu0
    %v314 = vsel %vm129, %v305, 0
    %v317 = vsel %vm129, %v306, 0
    %v320 = vsel %vm159, %v289, 0
    %322 = vmatpush.bf16.msra.mxu0 0
    %323 = vmatpush.bf16.msra.mxu0 0
    %324 = vmatpush.bf16.msra.mxu0 0
    %325 = vmatpush.bf16.msra.mxu0 0
    %326 = vmatpush.bf16.msra.mxu0 0
    %327 = vmatpush.bf16.msra.mxu0 0
    %328 = vmatpush.bf16.msra.mxu0 0
    %329 = vmatpush.bf16.msra.mxu0 %v320
    %330 = vmatmul.bf16.gmra.mxu0 %v314
    %v331 = vpop.f32.mrf.mxu0
    %v332 = vadd.f32 0.0, %v331
    %v333 = vpop.f32.mrf.mxu0
    %v334 = vadd.f32 0.0, %v333
    %335 = vmatmul.bf16.gmra.mxu0 %v317
    %v336 = vpop.f32.mrf.mxu0
    %v337 = vadd.f32 0.0, %v336
    %v338 = vpop.f32.mrf.mxu0
    %v339 = vadd.f32 0.0, %v338
    %340 = vdwg.mxu0
    %v342 = vunpack.c.l.b16 %v290
    %v343 = vpack.c.b16 %v342, %v342
    %344 = vrot.lane.b32.xlu0 %v343, 96
    %v345 = vpop.permute.xlu0 %344
    %347 = vxpose.xlu0.c.b16.start [1/8] %v345, 128
    %348 = vxpose.xlu0.c.b16.cont [2/8] 0, 128
    %349 = vxpose.xlu0.c.b16.cont [3/8] 0, 128
    %350 = vxpose.xlu0.c.b16.cont [4/8] 0, 128
    %351 = vxpose.xlu0.c.b16.cont [5/8] 0, 128
    %352 = vxpose.xlu0.c.b16.cont [6/8] 0, 128
    %353 = vxpose.xlu0.c.b16.cont [7/8] 0, 128
    %354 = vxpose.xlu0.c.b16.end [8/8] 0, 128
    %v355 = vpop.trf.xlu0
    %v356 = vpop.trf.xlu0
    %v357 = vpop.trf.xlu0
    %v358 = vpop.trf.xlu0
    %v359 = vpop.trf.xlu0
    %v360 = vpop.trf.xlu0
    %v361 = vpop.trf.xlu0
    %v362 = vpop.trf.xlu0
    %v364 = vsel %vm129, %v355, 0
    %v367 = vsel %vm129, %v356, 0
    %v370 = vsel %vm159, %v290, 0
    %372 = vmatpush.bf16.msra.mxu0 0
    %373 = vmatpush.bf16.msra.mxu0 0
    %374 = vmatpush.bf16.msra.mxu0 0
    %375 = vmatpush.bf16.msra.mxu0 0
    %376 = vmatpush.bf16.msra.mxu0 0
    %377 = vmatpush.bf16.msra.mxu0 0
    %378 = vmatpush.bf16.msra.mxu0 0
    %379 = vmatpush.bf16.msra.mxu0 %v370
    %380 = vmatmul.bf16.gmra.mxu0 %v364
    %v381 = vpop.f32.mrf.mxu0
    %v382 = vadd.f32 0.0, %v381
    %v383 = vpop.f32.mrf.mxu0
    %v384 = vadd.f32 0.0, %v383
    %385 = vmatmul.bf16.gmra.mxu0 %v367
    %v386 = vpop.f32.mrf.mxu0
    %v387 = vadd.f32 0.0, %v386
    %v388 = vpop.f32.mrf.mxu0
    %v389 = vadd.f32 0.0, %v388
    %390 = vdwg.mxu0
    %v391 = vmul.f32 %v332, 0.17677669
    %v392 = vmul.f32 %v334, 0.17677669
    %v393 = vmul.f32 %v337, 0.17677669
    %v394 = vmul.f32 %v339, 0.17677669
    %v395 = vmul.f32 %v382, 0.17677669
    %v396 = vmul.f32 %v384, 0.17677669
    %v397 = vmul.f32 %v387, 0.17677669
    %v398 = vmul.f32 %v389, 0.17677669
    %v399 = vsel %vm59, %v391, -inf
    %400 = vmax.xlane.f32.xlu0 %v399
    %v401 = vpop.xlane.xlu0 %400
    %v402 = vsel %vm59, %v392, -inf
    %403 = vmax.xlane.f32.xlu0 %v402
    %v404 = vpop.xlane.xlu0 %403
    %v405 = vsel %vm59, %v393, -inf
    %406 = vmax.xlane.f32.xlu0 %v405
    %v407 = vpop.xlane.xlu0 %406
    %v408 = vsel %vm59, %v394, -inf
    %409 = vmax.xlane.f32.xlu0 %v408
    %v410 = vpop.xlane.xlu0 %409
    %v411 = vsel %vm59, %v395, -inf
    %412 = vmax.xlane.f32.xlu0 %v411
    %v413 = vpop.xlane.xlu0 %412
    %v414 = vsel %vm59, %v396, -inf
    %415 = vmax.xlane.f32.xlu0 %v414
    %v416 = vpop.xlane.xlu0 %415
    %v417 = vsel %vm59, %v397, -inf
    %418 = vmax.xlane.f32.xlu0 %v417
    %v419 = vpop.xlane.xlu0 %418
    %v420 = vsel %vm59, %v398, -inf
    %421 = vmax.xlane.f32.xlu0 %v420
    %v422 = vpop.xlane.xlu0 %421
    %v423 = vsub.f32 %v391, %v401
    %v424 = vsub.f32 %v392, %v404
    %v425 = vsub.f32 %v393, %v407
    %v426 = vsub.f32 %v394, %v410
    %v427 = vsub.f32 %v395, %v413
    %v428 = vsub.f32 %v396, %v416
    %v429 = vsub.f32 %v397, %v419
    %v430 = vsub.f32 %v398, %v422
    %v431 = vmul.f32 %v423, 1.442695
    %v432 = vpow.pop %v431
    %v433 = vmul.f32 %v424, 1.442695
    %v434 = vpow.pop %v433
    %v435 = vmul.f32 %v425, 1.442695
    %v436 = vpow.pop %v435
    %v437 = vmul.f32 %v426, 1.442695
    %v438 = vpow.pop %v437
    %v439 = vmul.f32 %v427, 1.442695
    %v440 = vpow.pop %v439
    %v441 = vmul.f32 %v428, 1.442695
    %v442 = vpow.pop %v441
    %v443 = vmul.f32 %v429, 1.442695
    %v444 = vpow.pop %v443
    %v445 = vmul.f32 %v430, 1.442695
    %v446 = vpow.pop %v445
    %v447 = vsel %vm59, %v432, 0.0
    %448 = vadd.xlane.f32.xlu0 %v447
    %v449 = vpop.xlane.xlu0 %448
    %v450 = vsel %vm59, %v434, 0.0
    %451 = vadd.xlane.f32.xlu0 %v450
    %v452 = vpop.xlane.xlu0 %451
    %v453 = vsel %vm59, %v436, 0.0
    %454 = vadd.xlane.f32.xlu0 %v453
    %v455 = vpop.xlane.xlu0 %454
    %v456 = vsel %vm59, %v438, 0.0
    %457 = vadd.xlane.f32.xlu0 %v456
    %v458 = vpop.xlane.xlu0 %457
    %v459 = vsel %vm59, %v440, 0.0
    %460 = vadd.xlane.f32.xlu0 %v459
    %v461 = vpop.xlane.xlu0 %460
    %v462 = vsel %vm59, %v442, 0.0
    %463 = vadd.xlane.f32.xlu0 %v462
    %v464 = vpop.xlane.xlu0 %463
    %v465 = vsel %vm59, %v444, 0.0
    %466 = vadd.xlane.f32.xlu0 %v465
    %v467 = vpop.xlane.xlu0 %466
    %v468 = vsel %vm59, %v446, 0.0
    %469 = vadd.xlane.f32.xlu0 %v468
    %v470 = vpop.xlane.xlu0 %469
    %v471 = vrcp.pop %v449
    %v472 = vrcp.pop %v452
    %v473 = vrcp.pop %v455
    %v474 = vrcp.pop %v458
    %v475 = vrcp.pop %v461
    %v476 = vrcp.pop %v464
    %v477 = vrcp.pop %v467
    %v478 = vrcp.pop %v470
    %v479 = vmul.f32 %v432, %v471
    %v480 = vmul.f32 %v434, %v472
    %v481 = vmul.f32 %v436, %v473
    %v482 = vmul.f32 %v438, %v474
    %v483 = vmul.f32 %v440, %v475
    %v484 = vmul.f32 %v442, %v476
    %v485 = vmul.f32 %v444, %v477
    %v486 = vmul.f32 %v446, %v478
    %v487 = vpack.c.bf16 %v479, %v479
    %v488 = vpack.c.bf16 %v480, %v480
    %v489 = vpack.c.bf16 %v481, %v481
    %v490 = vpack.c.bf16 %v482, %v482
    %v491 = vpack.c.bf16 %v483, %v483
    %v492 = vpack.c.bf16 %v484, %v484
    %v493 = vpack.c.bf16 %v485, %v485
    %v494 = vpack.c.bf16 %v486, %v486
    %495 = vrot.lane.b32.xlu0 %v293, 64
    %v496 = vpop.permute.xlu0 %495
    %v501 = vunpack.c.l.b16 %v487
    %v502 = vunpack.c.l.b16 %v488
    %v503 = vunpack.c.l.b16 %v489
    %v504 = vunpack.c.l.b16 %v490
    %v505 = vpack.c.b16 %v502, %v501
    %v506 = vpack.c.b16 %v504, %v503
    %v510 = vsel %vm59, %v496, 0
    %512 = vmatpush.bf16.msra.mxu0 0
    %513 = vmatpush.bf16.msra.mxu0 0
    %514 = vmatpush.bf16.msra.mxu0 0
    %515 = vmatpush.bf16.msra.mxu0 0
    %516 = vmatpush.bf16.msra.mxu0 0
    %517 = vmatpush.bf16.msra.mxu0 0
    %518 = vmatpush.bf16.msra.mxu0 %v506
    %519 = vmatpush.bf16.msra.mxu0 %v505
    %520 = vmatmul.bf16.gmra.mxu0 %v510
    %v521 = vpop.f32.mrf.mxu0
    %v522 = vadd.f32 0.0, %v521
    %v523 = vpop.f32.mrf.mxu0
    %524 = vdwg.mxu0
    %525 = vrot.lane.b32.xlu0 %v343, 64
    %v526 = vpop.permute.xlu0 %525
    %v531 = vunpack.c.l.b16 %v491
    %v532 = vunpack.c.l.b16 %v492
    %v533 = vunpack.c.l.b16 %v493
    %v534 = vunpack.c.l.b16 %v494
    %v535 = vpack.c.b16 %v532, %v531
    %v536 = vpack.c.b16 %v534, %v533
    %v540 = vsel %vm59, %v526, 0
    %542 = vmatpush.bf16.msra.mxu0 0
    %543 = vmatpush.bf16.msra.mxu0 0
    %544 = vmatpush.bf16.msra.mxu0 0
    %545 = vmatpush.bf16.msra.mxu0 0
    %546 = vmatpush.bf16.msra.mxu0 0
    %547 = vmatpush.bf16.msra.mxu0 0
    %548 = vmatpush.bf16.msra.mxu0 %v536
    %549 = vmatpush.bf16.msra.mxu0 %v535
    %550 = vmatmul.bf16.gmra.mxu0 %v540
    %v551 = vpop.f32.mrf.mxu0
    %v552 = vadd.f32 0.0, %v551
    %v553 = vpop.f32.mrf.mxu0
    %554 = vdwg.mxu0
    %v555 = vld [vmem:[%s3] sm:$0x1]
    %v557 = vperm.slane %v555, 0
    %v559 = vmul.f32 %v522, %v557
    %v560 = vmul.f32 %v552, %v557
    %v561 = vsel %vm59, %v559, 0.0
    %562 = vadd.xlane.f32.xlu0 %v561
    %v563 = vpop.xlane.xlu0 %562
    %v564 = vsel %vm59, %v560, 0.0
    %565 = vadd.xlane.f32.xlu0 %v564
    %v566 = vpop.xlane.xlu0 %565
    %v567 = vld [vmem:[#allocation2] sm:$0x1]
    %v569 = vperm.slane %v567, 0
    %v571 = vadd.f32 %v563, %v569
    %v572 = vadd.f32 %v566, %v569
    %574 = vset.pattern.permute.xlu0 0
    %575 = vperm.xlu0 %574, %v571
    %v576 = vpop.permute.xlu0 %575
    %579 = vset.pattern.permute.xlu0 0
    %580 = vperm.xlu0 %579, %v572
    %v581 = vpop.permute.xlu0 %580
    %v583 = vmul.f32 %v576, %v522
    %v584 = vmul.f32 %v581, %v552
    %v585 = vsel %vm59, %v32, 0.0
    %v586 = vrot.slane %v585, 4
    %v587 = vadd.f32 %v585, %v586
    %v588 = vrot.slane %v587, 2
    %v589 = vadd.f32 %v587, %v588
    %v590 = vrot.slane %v589, 1
    %v591 = vadd.f32 %v589, %v590
    %v592 = vsel %vm59, %v33, 0.0
    %v593 = vrot.slane %v592, 4
    %v594 = vadd.f32 %v592, %v593
    %v595 = vrot.slane %v594, 2
    %v596 = vadd.f32 %v594, %v595
    %v597 = vrot.slane %v596, 1
    %v598 = vadd.f32 %v596, %v597
    %v599 = vmul.f32 %v591, 0.125
    %v600 = vmul.f32 %v598, 0.125
    %v601 = vsel %vm59, %v583, 0.0
    %v602 = vrot.slane %v601, 4
    %v603 = vadd.f32 %v601, %v602
    %v604 = vrot.slane %v603, 2
    %v605 = vadd.f32 %v603, %v604
    %v606 = vrot.slane %v605, 1
    %v607 = vadd.f32 %v605, %v606
    %v608 = vsel %vm59, %v584, 0.0
    %v609 = vrot.slane %v608, 4
    %v610 = vadd.f32 %v608, %v609
    %v611 = vrot.slane %v610, 2
    %v612 = vadd.f32 %v610, %v611
    %v613 = vrot.slane %v612, 1
    %v614 = vadd.f32 %v612, %v613
    %v615 = vmul.f32 %v607, 0.125
    %v616 = vmul.f32 %v614, 0.125
    %v617 = vsel %vm59, %v32, -inf
    %v618 = vrot.slane %v617, 4
    %v619 = vmax.f32 %v617, %v618
    %v620 = vrot.slane %v619, 2
    %v621 = vmax.f32 %v619, %v620
    %v622 = vrot.slane %v621, 1
    %v623 = vmax.f32 %v621, %v622
    %v624 = vsel %vm59, %v33, -inf
    %v625 = vrot.slane %v624, 4
    %v626 = vmax.f32 %v624, %v625
    %v627 = vrot.slane %v626, 2
    %v628 = vmax.f32 %v626, %v627
    %v629 = vrot.slane %v628, 1
    %v630 = vmax.f32 %v628, %v629
    %v631 = vsel %vm59, %v583, -inf
    %v632 = vrot.slane %v631, 4
    %v633 = vmax.f32 %v631, %v632
    %v634 = vrot.slane %v633, 2
    %v635 = vmax.f32 %v633, %v634
    %v636 = vrot.slane %v635, 1
    %v637 = vmax.f32 %v635, %v636
    %v638 = vsel %vm59, %v584, -inf
    %v639 = vrot.slane %v638, 4
    %v640 = vmax.f32 %v638, %v639
    %v641 = vrot.slane %v640, 2
    %v642 = vmax.f32 %v640, %v641
    %v643 = vrot.slane %v642, 1
    %v644 = vmax.f32 %v642, %v643
    %v645 = vld [vmem:[%s5] sm:$0xf]
    %v646 = vld [vmem:[%s5 + $0x4] sm:$0xf]
    %v647 = vld [vmem:[%s5 + $0x8] sm:$0xf]
    %v648 = vld [vmem:[%s5 + $0xc] sm:$0xf]
    %v649 = vld [vmem:[%s5 + $0x10] sm:$0xf]
    %v650 = vld [vmem:[%s5 + $0x14] sm:$0xf]
    %v651 = vld [vmem:[%s5 + $0x18] sm:$0xf]
    %v652 = vld [vmem:[%s5 + $0x1c] sm:$0xf]
    %v653 = vld [vmem:[%s5 + $0x20] sm:$0xf]
    %v654 = vld [vmem:[%s5 + $0x24] sm:$0xf]
    %v655 = vld [vmem:[%s5 + $0x28] sm:$0xf]
    %v656 = vld [vmem:[%s5 + $0x2c] sm:$0xf]
    %v657 = vld [vmem:[%s5 + $0x30] sm:$0xf]
    %v658 = vld [vmem:[%s5 + $0x34] sm:$0xf]
    %v659 = vld [vmem:[%s5 + $0x38] sm:$0xf]
    %v660 = vld [vmem:[%s5 + $0x3c] sm:$0xf]
    %v661 = vpack.c.bf16 %v599, %v599
    %v662 = vpack.c.bf16 %v600, %v600
    %v663 = vpack.c.bf16 %v615, %v615
    %v664 = vpack.c.bf16 %v616, %v616
    %v667 = vunpack.c.l.b16 %v663
    %v668 = vunpack.c.l.b16 %v664
    %vm669 = vcmask 1041409
    %v670 = vsel %vm669, %v668, %v667
    %v671 = vpack.c.b16 %v670, %v670
    %v676 = vunpack.c.l.b16 %v649
    %v677 = vunpack.c.l.b16 %v650
    %v678 = vunpack.c.l.b16 %v651
    %v679 = vunpack.c.l.b16 %v652
    %v680 = vpack.c.b16 %v677, %v676
    %v681 = vpack.c.b16 %v679, %v678
    %v685 = vsel %vm59, %v671, 0
    %687 = vmatpush.bf16.msra.mxu0 0
    %688 = vmatpush.bf16.msra.mxu0 0
    %689 = vmatpush.bf16.msra.mxu0 0
    %690 = vmatpush.bf16.msra.mxu0 0
    %691 = vmatpush.bf16.msra.mxu0 0
    %692 = vmatpush.bf16.msra.mxu0 0
    %693 = vmatpush.bf16.msra.mxu0 %v681
    %694 = vmatpush.bf16.msra.mxu0 %v680
    %695 = vmatmul.bf16.gmra.mxu0 %v685
    %v696 = vpop.f32.mrf.mxu0
    %v697 = vadd.f32 0.0, %v696
    %v698 = vpop.f32.mrf.mxu0
    %699 = vdwg.mxu0
    %v702 = vunpack.c.l.b16 %v661
    %v703 = vunpack.c.l.b16 %v662
    %v704 = vsel %vm669, %v703, %v702
    %v705 = vpack.c.b16 %v704, %v704
    %v710 = vunpack.c.l.b16 %v645
    %v711 = vunpack.c.l.b16 %v646
    %v712 = vunpack.c.l.b16 %v647
    %v713 = vunpack.c.l.b16 %v648
    %v714 = vpack.c.b16 %v711, %v710
    %v715 = vpack.c.b16 %v713, %v712
    %v719 = vsel %vm59, %v705, 0
    %721 = vmatpush.bf16.msra.mxu0 0
    %722 = vmatpush.bf16.msra.mxu0 0
    %723 = vmatpush.bf16.msra.mxu0 0
    %724 = vmatpush.bf16.msra.mxu0 0
    %725 = vmatpush.bf16.msra.mxu0 0
    %726 = vmatpush.bf16.msra.mxu0 0
    %727 = vmatpush.bf16.msra.mxu0 %v715
    %728 = vmatpush.bf16.msra.mxu0 %v714
    %729 = vmatmul.bf16.gmra.mxu0 %v719
    %v730 = vpop.f32.mrf.mxu0
    %v731 = vadd.f32 %v697, %v730
    %v732 = vpop.f32.mrf.mxu0
    %733 = vdwg.mxu0
    %v734 = vpack.c.bf16 %v623, %v623
    %v735 = vpack.c.bf16 %v630, %v630
    %v738 = vunpack.c.l.b16 %v734
    %v739 = vunpack.c.l.b16 %v735
    %v740 = vsel %vm669, %v739, %v738
    %v741 = vpack.c.b16 %v740, %v740
    %v746 = vunpack.c.l.b16 %v653
    %v747 = vunpack.c.l.b16 %v654
    %v748 = vunpack.c.l.b16 %v655
    %v749 = vunpack.c.l.b16 %v656
    %v750 = vpack.c.b16 %v747, %v746
    %v751 = vpack.c.b16 %v749, %v748
    %v755 = vsel %vm59, %v741, 0
    %757 = vmatpush.bf16.msra.mxu0 0
    %758 = vmatpush.bf16.msra.mxu0 0
    %759 = vmatpush.bf16.msra.mxu0 0
    %760 = vmatpush.bf16.msra.mxu0 0
    %761 = vmatpush.bf16.msra.mxu0 0
    %762 = vmatpush.bf16.msra.mxu0 0
    %763 = vmatpush.bf16.msra.mxu0 %v751
    %764 = vmatpush.bf16.msra.mxu0 %v750
    %765 = vmatmul.bf16.gmra.mxu0 %v755
    %v766 = vpop.f32.mrf.mxu0
    %v767 = vadd.f32 0.0, %v766
    %v768 = vpop.f32.mrf.mxu0
    %769 = vdwg.mxu0
    %v770 = vadd.f32 %v731, %v767
    %v771 = vpack.c.bf16 %v637, %v637
    %v772 = vpack.c.bf16 %v644, %v644
    %v775 = vunpack.c.l.b16 %v771
    %v776 = vunpack.c.l.b16 %v772
    %v777 = vsel %vm669, %v776, %v775
    %v778 = vpack.c.b16 %v777, %v777
    %v783 = vunpack.c.l.b16 %v657
    %v784 = vunpack.c.l.b16 %v658
    %v785 = vunpack.c.l.b16 %v659
    %v786 = vunpack.c.l.b16 %v660
    %v787 = vpack.c.b16 %v784, %v783
    %v788 = vpack.c.b16 %v786, %v785
    %v792 = vsel %vm59, %v778, 0
    %794 = vmatpush.bf16.msra.mxu0 0
    %795 = vmatpush.bf16.msra.mxu0 0
    %796 = vmatpush.bf16.msra.mxu0 0
    %797 = vmatpush.bf16.msra.mxu0 0
    %798 = vmatpush.bf16.msra.mxu0 0
    %799 = vmatpush.bf16.msra.mxu0 0
    %800 = vmatpush.bf16.msra.mxu0 %v788
    %801 = vmatpush.bf16.msra.mxu0 %v787
    %802 = vmatmul.bf16.gmra.mxu0 %v792
    %v803 = vpop.f32.mrf.mxu0
    %v804 = vadd.f32 0.0, %v803
    %v805 = vpop.f32.mrf.mxu0
    %806 = vdwg.mxu0
    %v807 = vadd.f32 %v770, %v804
    %v808 = vld [vmem:[%s6] sm:$0x1]
    %v810 = vperm.slane %v808, 0
    %v812 = vadd.f32 %v807, %v810
    %vm813 = vcmask 25600
    %814 = vst.msk [vmem:[#allocation3] sm:$0x3] %vm813, %v812
    // Predicated region
    $region30: #{tpu_custom_call.1} parent=1 // pred_check
      _
    $region31: #{tpu_custom_call.1} parent=1 // pred_check_branch
      %816 = sbr.rel (0) target = $region33
    $region32: #{tpu_custom_call.1} parent=1 // pred_region
      %818 = vsyncadd [#allocation4], 0
      %s820 = sshll.u32 [#allocation3], 4
      %s821 = int_to_ptr.vmem [resolvable:$true] %s820
      %s822 = sshll.u32 %s7, 4
      %s823 = int_to_ptr.hbm [resolvable:$true] %s822
      %825 = dma.vmem_to_hbm [thread:$0]  %s821, 32, %s823, [#allocation4]
    $region33: #{tpu_custom_call.1} parent=1 // pred_fallthru
      _
    // Predicated region
    $region34: #{tpu_custom_call.1} parent=1 // pred_check
      _
    $region35: #{tpu_custom_call.1} parent=1 // pred_check_branch
      %827 = sbr.rel (0) target = $region37
    $region36: #{tpu_custom_call.1} parent=1 // pred_region
      %829 = dma.done [#allocation4], 32
    $region37: #{tpu_custom_call.1} parent=1 // pred_fallthru
      _
    %830 = vsyncpa [#allocation4], 1

</llo_original>
